<compile_context>
chip_gen: v5e
topology: v5e:2x2
jax: 0.10.0
libtpu: 0.0.40
codegen_flags: <defaults>
</compile_context>

<pallas_src>
import math
import functools

import jax
import jax.numpy as jnp
from jax.experimental import pallas as pl
from jax.experimental.pallas import tpu as pltpu


def _pick_tq(seq_len):
    """Largest query-tile <= 256 that divides seq_len (multiple of 8), else full."""
    if seq_len <= 256:
        return seq_len
    for cand in (256, 128, 64, 32, 16, 8):
        if seq_len % cand == 0:
            return cand
    return seq_len


def _mhla_kernel(x_ref, wq_ref, wk_ref, wv_ref, wd_ref, wuk_ref, wuv_ref, wo_ref,
                 out_ref, latent_ref, *, num_heads, lambda_decay, tq):
    """One (batch, query-tile) step.

    x_ref      : (1, S, D)  bf16 input block (full sequence of one batch element)
    w*_ref     : (in, out)  bf16 pre-transposed linear weights (W_q pre-scaled)
    out_ref    : (1, TQ, D) attention output tile (after W_o)
    latent_ref : (1, S, L)  latent_kv (full sequence; rewritten per q-tile — same value)
    """
    S = x_ref.shape[1]
    D = x_ref.shape[2]
    H = num_heads
    Dh = D // H

    cdt = x_ref.dtype                  # bf16 compute dtype for MXU operands
    f32 = jnp.float32

    x = x_ref[0]                                                   # (S, D) bf16

    # ---- key-side projections over the full sequence (bf16 MXU, f32 acc) ----
    # NOTE: with multiple q-tiles these are recomputed per tile (cheap for the
    # module's typical seq_len; keeps VMEM bounded without an extra kernel).
    k = jnp.dot(x, wk_ref[...], preferred_element_type=f32)        # (S, D) f32
    v = jnp.dot(x, wv_ref[...], preferred_element_type=f32)        # (S, D) f32

    latent = jnp.dot((k + v).astype(cdt), wd_ref[...],
                     preferred_element_type=f32)                   # (S, L) f32
    latent_ref[0] = latent.astype(latent_ref.dtype)

    latent_c = latent.astype(cdt)
    k_rec = jnp.dot(latent_c, wuk_ref[...], preferred_element_type=f32)  # (S, D)
    v_rec = jnp.dot(latent_c, wuv_ref[...], preferred_element_type=f32)  # (S, D)

    # ---- query tile (1/sqrt(D) scale is folded into wq by the wrapper) ------
    q0 = pl.multiple_of(pl.program_id(1) * tq, tq)
    xq = x_ref[0, pl.ds(q0, tq), :]                                # (TQ, D) bf16
    q = jnp.dot(xq, wq_ref[...], preferred_element_type=f32)       # (TQ, D) f32

    # ---- all heads in one batched dot_general (H = batch dim) ---------------
    q3 = jnp.transpose(q.astype(cdt).reshape(tq, H, Dh), (1, 0, 2))      # (H, TQ, Dh)
    k3 = jnp.transpose(k_rec.astype(cdt).reshape(S, H, Dh), (1, 0, 2))   # (H, S, Dh)
    v3 = jnp.transpose(v_rec.astype(cdt).reshape(S, H, Dh), (1, 0, 2))   # (H, S, Dh)

    scores = jnp.einsum("hqd,hkd->hqk", q3, k3,
                        preferred_element_type=f32)                # (H, TQ, S) f32

    # ---- time decay generated in-kernel: exp(-lambda * |i - j|) -------------
    row = jax.lax.broadcasted_iota(jnp.int32, (tq, S), 0) + q0     # global query idx
    col = jax.lax.broadcasted_iota(jnp.int32, (tq, S), 1)          # key idx
    decay = jnp.exp((-lambda_decay) * jnp.abs(row - col).astype(f32))   # (TQ, S)
    scores = scores * decay[None, :, :]

    # ---- softmax (normalize after the PV matmul) -----------------------------
    m = jnp.max(scores, axis=-1, keepdims=True)                    # (H, TQ, 1)
    e = jnp.exp(scores - m)                                        # (H, TQ, S) f32
    l = jnp.sum(e, axis=-1, keepdims=True)                         # (H, TQ, 1)

    o = jnp.einsum("hqk,hkd->hqd", e.astype(cdt), v3,
                   preferred_element_type=f32)                     # (H, TQ, Dh) f32
    o = o * pl.reciprocal(l, approx=True)                          # normalize (EUP)

    attn = jnp.transpose(o, (1, 0, 2)).reshape(tq, D)              # (TQ, D)
    out = jnp.dot(attn.astype(cdt), wo_ref[...], preferred_element_type=f32)
    out_ref[0] = out.astype(out_ref.dtype)


def mhla_forward(x, params, *, num_heads, lambda_decay=0.01):
    """Pallas forward of TimeAwareMultiHeadLatentAttention1 (memory=None path).

    x      : (B, S, D) float32
    params : dict of PyTorch-convention weights (out_features, in_features)
    returns (output (B, S, D), latent_kv (B, S, L))
    """
    B, S, D = x.shape
    L = params["W_down_kv"].shape[0]
    if D % num_heads != 0:
        raise ValueError(f"d_model={D} must be divisible by num_heads={num_heads}")

    cdt = jnp.bfloat16
    scale = 1.0 / math.sqrt(D)

    # Pre-transpose to (in, out); fold the score scale into W_q; cast to bf16.
    wq = (params["W_q"].T * scale).astype(cdt)
    wk = params["W_k"].T.astype(cdt)
    wv = params["W_v"].T.astype(cdt)
    wd = params["W_down_kv"].T.astype(cdt)
    wuk = params["W_up_k"].T.astype(cdt)
    wuv = params["W_up_v"].T.astype(cdt)
    wo = params["W_o"].T.astype(cdt)

    x_in = x.astype(cdt)

    tq = _pick_tq(S)
    n_q = S // tq

    kernel = functools.partial(_mhla_kernel, num_heads=num_heads,
                               lambda_decay=float(lambda_decay), tq=tq)

    # Weight blocks have a constant index_map across the grid, so the pipeline
    # fetches them once and keeps them resident.
    def wspec(shape):
        return pl.BlockSpec(shape, lambda b, qi: (0, 0))

    out, latent = pl.pallas_call(
        kernel,
        out_shape=(
            jax.ShapeDtypeStruct((B, S, D), x.dtype),
            jax.ShapeDtypeStruct((B, S, L), x.dtype),
        ),
        grid_spec=pltpu.PrefetchScalarGridSpec(
            num_scalar_prefetch=0,
            grid=(B, n_q),
            in_specs=[
                pl.BlockSpec((1, S, D), lambda b, qi: (b, 0, 0)),   # x (full seq)
                wspec(wq.shape), wspec(wk.shape), wspec(wv.shape),
                wspec(wd.shape), wspec(wuk.shape), wspec(wuv.shape),
                wspec(wo.shape),
            ],
            out_specs=(
                pl.BlockSpec((1, tq, D), lambda b, qi: (b, qi, 0)),  # output q-tile
                pl.BlockSpec((1, S, L), lambda b, qi: (b, 0, 0)),    # latent_kv
            ),
        ),
        compiler_params=pltpu.CompilerParams(
            dimension_semantics=("parallel", "parallel"),
            vmem_limit_bytes=64 * 1024 * 1024,
        ),
    )(x_in, wq, wk, wv, wd, wuk, wuv, wo)
    return out, latent


def mhla_reference(x, params, *, num_heads, lambda_decay=0.01):
    """Pure-JAX f32 reference mirroring the PyTorch forward (memory=None)."""
    B, S, D = x.shape
    q = x @ params["W_q"].T
    k = x @ params["W_k"].T
    v = x @ params["W_v"].T
    latent = (k + v) @ params["W_down_kv"].T
    k_rec = latent @ params["W_up_k"].T
    v_rec = latent @ params["W_up_v"].T

    dh = D // num_heads

    def to_heads(a):
        return a.reshape(B, S, num_heads, dh).transpose(0, 2, 1, 3)

    qh, kh, vh = to_heads(q), to_heads(k_rec), to_heads(v_rec)

    scores = jnp.einsum("bhqd,bhkd->bhqk", qh, kh) / math.sqrt(D)
    t = jnp.arange(S, dtype=jnp.float32)
    decay = jnp.exp(-lambda_decay * jnp.abs(t[:, None] - t[None, :]))
    scores = scores * decay[None, None]
    w = jax.nn.softmax(scores, axis=-1)
    attn = jnp.einsum("bhqk,bhkd->bhqd", w, vh)
    attn = attn.transpose(0, 2, 1, 3).reshape(B, S, D)
    out = attn @ params["W_o"].T
    return out, latent


if __name__ == "__main__":
    # Small, PyTorch-module-consistent shapes.
    B, S, D, H, L = 2, 8, 32, 4, 16
    lambda_decay = 0.01

    key = jax.random.PRNGKey(0)
    keys = jax.random.split(key, 8)

    def linear_w(k, out_f, in_f):
        # Deterministic init matching nn.Linear's uniform(-1/sqrt(in), 1/sqrt(in)).
        bound = 1.0 / math.sqrt(in_f)
        return jax.random.uniform(k, (out_f, in_f), jnp.float32, -bound, bound)

    params = {
        "W_q":       linear_w(keys[0], D, D),
        "W_k":       linear_w(keys[1], D, D),
        "W_v":       linear_w(keys[2], D, D),
        "W_o":       linear_w(keys[3], D, D),
        "W_down_kv": linear_w(keys[4], L, D),
        "W_up_k":    linear_w(keys[5], D, L),
        "W_up_v":    linear_w(keys[6], D, L),
    }

    x = jax.random.normal(keys[7], (B, S, D), jnp.float32)

    out, latent = mhla_forward(x, params, num_heads=H, lambda_decay=lambda_decay)
    out = jax.block_until_ready(out)
    latent = jax.block_until_ready(latent)

    out_ref, latent_ref = mhla_reference(x, params, num_heads=H,
                                         lambda_decay=lambda_decay)
    assert out.shape == (B, S, D) and latent.shape == (B, S, L)
    # bf16 MXU operands + approx reciprocal -> looser tolerance vs f32 reference.
    assert jnp.allclose(out, out_ref, atol=5e-2, rtol=5e-2)
    assert jnp.allclose(latent, latent_ref, atol=5e-2, rtol=5e-2)

    print("KERNEL_OK")
</pallas_src>

<mosaic_0001>
module attributes {stable_mosaic.version = 11 : i64} {
  func.func @_mhla_kernel(%arg0: i32, %arg1: i32, %arg2: memref<1x8x32xbf16, #tpu.memory_space<vmem>>, %arg3: memref<32x32xbf16, #tpu.memory_space<vmem>>, %arg4: memref<32x32xbf16, #tpu.memory_space<vmem>>, %arg5: memref<32x32xbf16, #tpu.memory_space<vmem>>, %arg6: memref<32x16xbf16, #tpu.memory_space<vmem>>, %arg7: memref<16x32xbf16, #tpu.memory_space<vmem>>, %arg8: memref<16x32xbf16, #tpu.memory_space<vmem>>, %arg9: memref<32x32xbf16, #tpu.memory_space<vmem>>, %arg10: memref<1x8x32xf32, #tpu.memory_space<vmem>>, %arg11: memref<1x8x16xf32, #tpu.memory_space<vmem>>) attributes {dimension_semantics = [#tpu.dimension_semantics<parallel>, #tpu.dimension_semantics<parallel>], iteration_bounds = array<i64: 2, 1>, scalar_prefetch = 0 : i64, scratch_operands = 0 : i64, tpu.core_type = #tpu.core_type<tc>, window_params = [{transform_indices = @transform_0, window_bounds = array<i64: 1, 8, 32>}, {pipeline_mode = #tpu.pipeline_mode<synchronous>, transform_indices = @transform_1, window_bounds = array<i64: 32, 32>}, {pipeline_mode = #tpu.pipeline_mode<synchronous>, transform_indices = @transform_2, window_bounds = array<i64: 32, 32>}, {pipeline_mode = #tpu.pipeline_mode<synchronous>, transform_indices = @transform_3, window_bounds = array<i64: 32, 32>}, {pipeline_mode = #tpu.pipeline_mode<synchronous>, transform_indices = @transform_4, window_bounds = array<i64: 32, 16>}, {pipeline_mode = #tpu.pipeline_mode<synchronous>, transform_indices = @transform_5, window_bounds = array<i64: 16, 32>}, {pipeline_mode = #tpu.pipeline_mode<synchronous>, transform_indices = @transform_6, window_bounds = array<i64: 16, 32>}, {pipeline_mode = #tpu.pipeline_mode<synchronous>, transform_indices = @transform_7, window_bounds = array<i64: 32, 32>}, {transform_indices = @transform_8, window_bounds = array<i64: 1, 8, 32>}, {transform_indices = @transform_9, window_bounds = array<i64: 1, 8, 16>}]} {
    %c0 = arith.constant 0 : index
    %c0_0 = arith.constant 0 : index
    %c0_1 = arith.constant 0 : index
    %0 = vector.load %arg2[%c0, %c0_0, %c0_1] : memref<1x8x32xbf16, #tpu.memory_space<vmem>>, vector<1x8x32xbf16>
    %1 = vector.shape_cast %0 : vector<1x8x32xbf16> to vector<8x32xbf16>
    %c0_2 = arith.constant 0 : index
    %c0_3 = arith.constant 0 : index
    %2 = vector.load %arg4[%c0_2, %c0_3] : memref<32x32xbf16, #tpu.memory_space<vmem>>, vector<32x32xbf16>
    %cst = arith.constant dense<0.000000e+00> : vector<8x32xf32>
    %3 = tpu.matmul %1, %2, %cst {dimension_numbers = #tpu.dot_dimension_numbers<[1], [0], [0], [1], [0, 0, 1, 1], [], []>} : vector<8x32xbf16>, vector<32x32xbf16>, vector<8x32xf32> -> vector<8x32xf32>
    %c0_4 = arith.constant 0 : index
    %c0_5 = arith.constant 0 : index
    %4 = vector.load %arg5[%c0_4, %c0_5] : memref<32x32xbf16, #tpu.memory_space<vmem>>, vector<32x32xbf16>
    %cst_6 = arith.constant dense<0.000000e+00> : vector<8x32xf32>
    %5 = tpu.matmul %1, %4, %cst_6 {dimension_numbers = #tpu.dot_dimension_numbers<[1], [0], [0], [1], [0, 0, 1, 1], [], []>} : vector<8x32xbf16>, vector<32x32xbf16>, vector<8x32xf32> -> vector<8x32xf32>
    %6 = arith.addf %3, %5 : vector<8x32xf32>
    %7 = arith.truncf %6 : vector<8x32xf32> to vector<8x32xbf16>
    %c0_7 = arith.constant 0 : index
    %c0_8 = arith.constant 0 : index
    %8 = vector.load %arg6[%c0_7, %c0_8] : memref<32x16xbf16, #tpu.memory_space<vmem>>, vector<32x16xbf16>
    %cst_9 = arith.constant dense<0.000000e+00> : vector<8x16xf32>
    %9 = tpu.matmul %7, %8, %cst_9 {dimension_numbers = #tpu.dot_dimension_numbers<[1], [0], [0], [1], [0, 0, 1, 1], [], []>} : vector<8x32xbf16>, vector<32x16xbf16>, vector<8x16xf32> -> vector<8x16xf32>
    %c0_10 = arith.constant 0 : index
    %c0_11 = arith.constant 0 : index
    %c0_12 = arith.constant 0 : index
    %10 = vector.load %arg11[%c0_10, %c0_11, %c0_12] : memref<1x8x16xf32, #tpu.memory_space<vmem>>, vector<1x8x16xf32>
    %11 = vector.shape_cast %10 : vector<1x8x16xf32> to vector<8x16xf32>
    %12 = vector.shape_cast %9 : vector<8x16xf32> to vector<1x8x16xf32>
    tpu.vector_store %arg11[%c0_10, %c0_11, %c0_12], %12 {strides = array<i32>} : memref<1x8x16xf32, #tpu.memory_space<vmem>>, vector<1x8x16xf32>,
    %13 = arith.truncf %9 : vector<8x16xf32> to vector<8x16xbf16>
    %c0_13 = arith.constant 0 : index
    %c0_14 = arith.constant 0 : index
    %14 = vector.load %arg7[%c0_13, %c0_14] : memref<16x32xbf16, #tpu.memory_space<vmem>>, vector<16x32xbf16>
    %cst_15 = arith.constant dense<0.000000e+00> : vector<8x32xf32>
    %15 = tpu.matmul %13, %14, %cst_15 {dimension_numbers = #tpu.dot_dimension_numbers<[1], [0], [0], [1], [0, 0, 1, 1], [], []>} : vector<8x16xbf16>, vector<16x32xbf16>, vector<8x32xf32> -> vector<8x32xf32>
    %c0_16 = arith.constant 0 : index
    %c0_17 = arith.constant 0 : index
    %16 = vector.load %arg8[%c0_16, %c0_17] : memref<16x32xbf16, #tpu.memory_space<vmem>>, vector<16x32xbf16>
    %cst_18 = arith.constant dense<0.000000e+00> : vector<8x32xf32>
    %17 = tpu.matmul %13, %16, %cst_18 {dimension_numbers = #tpu.dot_dimension_numbers<[1], [0], [0], [1], [0, 0, 1, 1], [], []>} : vector<8x16xbf16>, vector<16x32xbf16>, vector<8x32xf32> -> vector<8x32xf32>
    %c8_i32 = arith.constant 8 : i32
    %18 = arith.muli %arg1, %c8_i32 : i32
    %19 = tpu.assume_multiple %18, 8 : i32
    %c0_19 = arith.constant 0 : index
    %20 = arith.index_cast %19 : i32 to index
    %c0_20 = arith.constant 0 : index
    %21 = vector.load %arg2[%c0_19, %20, %c0_20] : memref<1x8x32xbf16, #tpu.memory_space<vmem>>, vector<1x8x32xbf16>
    %22 = vector.shape_cast %21 : vector<1x8x32xbf16> to vector<8x32xbf16>
    %c0_21 = arith.constant 0 : index
    %c0_22 = arith.constant 0 : index
    %23 = vector.load %arg3[%c0_21, %c0_22] : memref<32x32xbf16, #tpu.memory_space<vmem>>, vector<32x32xbf16>
    %cst_23 = arith.constant dense<0.000000e+00> : vector<8x32xf32>
    %24 = tpu.matmul %22, %23, %cst_23 {dimension_numbers = #tpu.dot_dimension_numbers<[1], [0], [0], [1], [0, 0, 1, 1], [], []>} : vector<8x32xbf16>, vector<32x32xbf16>, vector<8x32xf32> -> vector<8x32xf32>
    %25 = arith.truncf %24 : vector<8x32xf32> to vector<8x32xbf16>
    %26 = vector.shape_cast %25 : vector<8x32xbf16> to vector<8x4x8xbf16>
    %27 = tpu.transpose %26, [1, 0, 2] : vector<8x4x8xbf16> -> vector<4x8x8xbf16>
    %28 = arith.truncf %15 : vector<8x32xf32> to vector<8x32xbf16>
    %29 = vector.shape_cast %28 : vector<8x32xbf16> to vector<8x4x8xbf16>
    %30 = tpu.transpose %29, [1, 0, 2] : vector<8x4x8xbf16> -> vector<4x8x8xbf16>
    %31 = arith.truncf %17 : vector<8x32xf32> to vector<8x32xbf16>
    %32 = vector.shape_cast %31 : vector<8x32xbf16> to vector<8x4x8xbf16>
    %33 = tpu.transpose %32, [1, 0, 2] : vector<8x4x8xbf16> -> vector<4x8x8xbf16>
    "tpu.trace_start"() <{level = 10 : i32, message = "hqd,hkd->hqk"}> : () -> ()
    %cst_24 = arith.constant dense<0.000000e+00> : vector<4x8x8xf32>
    %34 = tpu.matmul %27, %30, %cst_24 {dimension_numbers = #tpu.dot_dimension_numbers<[2], [2], [1], [1], [0, 0, 0, 1, 1, 1], [0], [0]>} : vector<4x8x8xbf16>, vector<4x8x8xbf16>, vector<4x8x8xf32> -> vector<4x8x8xf32>
    "tpu.trace_stop"() : () -> ()
    %35 = tpu.iota {dimensions = array<i32: 0>} : vector<8x8xi32>
    %36 = vector.broadcast %19 : i32 to vector<8x8xi32>
    %37 = arith.addi %35, %36 : vector<8x8xi32>
    %38 = tpu.iota {dimensions = array<i32: 1>} : vector<8x8xi32>
    %39 = arith.subi %37, %38 : vector<8x8xi32>
    %40 = math.absi %39 : vector<8x8xi32>
    %41 = arith.sitofp %40 : vector<8x8xi32> to vector<8x8xf32>
    %cst_25 = arith.constant -0.00999999977 : f32
    %42 = vector.broadcast %cst_25 : f32 to vector<8x8xf32>
    %43 = arith.mulf %42, %41 : vector<8x8xf32>
    %44 = math.exp %43 : vector<8x8xf32>
    %45 = vector.shape_cast %44 : vector<8x8xf32> to vector<1x8x8xf32>
    %46 = vector.broadcast %45 : vector<1x8x8xf32> to vector<4x8x8xf32>
    %47 = arith.mulf %34, %46 : vector<4x8x8xf32>
    %cst_26 = arith.constant dense<0xFF800000> : vector<4x8xf32>
    %48 = vector.multi_reduction <maximumf>, %47, %cst_26 [2] : vector<4x8x8xf32> to vector<4x8xf32>
    %49 = vector.shape_cast %48 : vector<4x8xf32> to vector<4x8x1xf32>
    %50 = vector.broadcast %49 : vector<4x8x1xf32> to vector<4x8x8xf32>
    %51 = arith.subf %47, %50 : vector<4x8x8xf32>
    %52 = math.exp %51 : vector<4x8x8xf32>
    %cst_27 = arith.constant dense<0.000000e+00> : vector<4x8xf32>
    %53 = vector.multi_reduction <add>, %52, %cst_27 [2] : vector<4x8x8xf32> to vector<4x8xf32>
    %54 = vector.shape_cast %53 : vector<4x8xf32> to vector<4x8x1xf32>
    %55 = arith.truncf %52 : vector<4x8x8xf32> to vector<4x8x8xbf16>
    "tpu.trace_start"() <{level = 10 : i32, message = "hqk,hkd->hqd"}> : () -> ()
    %cst_28 = arith.constant dense<0.000000e+00> : vector<4x8x8xf32>
    %56 = tpu.matmul %55, %33, %cst_28 {dimension_numbers = #tpu.dot_dimension_numbers<[2], [1], [1], [2], [0, 0, 0, 1, 1, 2], [0], [0]>} : vector<4x8x8xbf16>, vector<4x8x8xbf16>, vector<4x8x8xf32> -> vector<4x8x8xf32>
    "tpu.trace_stop"() : () -> ()
    %57 = tpu.reciprocal %54 {approx = true} : vector<4x8x1xf32> -> vector<4x8x1xf32>
    %58 = vector.broadcast %57 : vector<4x8x1xf32> to vector<4x8x8xf32>
    %59 = arith.mulf %56, %58 : vector<4x8x8xf32>
    %60 = tpu.transpose %59, [1, 0, 2] : vector<4x8x8xf32> -> vector<8x4x8xf32>
    %61 = vector.shape_cast %60 : vector<8x4x8xf32> to vector<8x32xf32>
    %62 = arith.truncf %61 : vector<8x32xf32> to vector<8x32xbf16>
    %c0_29 = arith.constant 0 : index
    %c0_30 = arith.constant 0 : index
    %63 = vector.load %arg9[%c0_29, %c0_30] : memref<32x32xbf16, #tpu.memory_space<vmem>>, vector<32x32xbf16>
    %cst_31 = arith.constant dense<0.000000e+00> : vector<8x32xf32>
    %64 = tpu.matmul %62, %63, %cst_31 {dimension_numbers = #tpu.dot_dimension_numbers<[1], [0], [0], [1], [0, 0, 1, 1], [], []>} : vector<8x32xbf16>, vector<32x32xbf16>, vector<8x32xf32> -> vector<8x32xf32>
    %c0_32 = arith.constant 0 : index
    %c0_33 = arith.constant 0 : index
    %c0_34 = arith.constant 0 : index
    %65 = vector.load %arg10[%c0_32, %c0_33, %c0_34] : memref<1x8x32xf32, #tpu.memory_space<vmem>>, vector<1x8x32xf32>
    %66 = vector.shape_cast %65 : vector<1x8x32xf32> to vector<8x32xf32>
    %67 = vector.shape_cast %64 : vector<8x32xf32> to vector<1x8x32xf32>
    tpu.vector_store %arg10[%c0_32, %c0_33, %c0_34], %67 {strides = array<i32>} : memref<1x8x32xf32, #tpu.memory_space<vmem>>, vector<1x8x32xf32>,
    return
  }
  func.func @transform_0(%arg0: i32, %arg1: i32) -> (i32, i32, i32) {
    %c0_i32 = arith.constant 0 : i32
    %c0_i32_0 = arith.constant 0 : i32
    %c0_i32_1 = arith.constant 0 : i32
    return %arg0, %c0_i32, %c0_i32_0 : i32, i32, i32
  }
  func.func @transform_1(%arg0: i32, %arg1: i32) -> (i32, i32) {
    %c0_i32 = arith.constant 0 : i32
    %c0_i32_0 = arith.constant 0 : i32
    %c0_i32_1 = arith.constant 0 : i32
    return %c0_i32, %c0_i32_0 : i32, i32
  }
  func.func @transform_2(%arg0: i32, %arg1: i32) -> (i32, i32) {
    %c0_i32 = arith.constant 0 : i32
    %c0_i32_0 = arith.constant 0 : i32
    %c0_i32_1 = arith.constant 0 : i32
    return %c0_i32, %c0_i32_0 : i32, i32
  }
  func.func @transform_3(%arg0: i32, %arg1: i32) -> (i32, i32) {
    %c0_i32 = arith.constant 0 : i32
    %c0_i32_0 = arith.constant 0 : i32
    %c0_i32_1 = arith.constant 0 : i32
    return %c0_i32, %c0_i32_0 : i32, i32
  }
  func.func @transform_4(%arg0: i32, %arg1: i32) -> (i32, i32) {
    %c0_i32 = arith.constant 0 : i32
    %c0_i32_0 = arith.constant 0 : i32
    %c0_i32_1 = arith.constant 0 : i32
    return %c0_i32, %c0_i32_0 : i32, i32
  }
  func.func @transform_5(%arg0: i32, %arg1: i32) -> (i32, i32) {
    %c0_i32 = arith.constant 0 : i32
    %c0_i32_0 = arith.constant 0 : i32
    %c0_i32_1 = arith.constant 0 : i32
    return %c0_i32, %c0_i32_0 : i32, i32
  }
  func.func @transform_6(%arg0: i32, %arg1: i32) -> (i32, i32) {
    %c0_i32 = arith.constant 0 : i32
    %c0_i32_0 = arith.constant 0 : i32
    %c0_i32_1 = arith.constant 0 : i32
    return %c0_i32, %c0_i32_0 : i32, i32
  }
  func.func @transform_7(%arg0: i32, %arg1: i32) -> (i32, i32) {
    %c0_i32 = arith.constant 0 : i32
    %c0_i32_0 = arith.constant 0 : i32
    %c0_i32_1 = arith.constant 0 : i32
    return %c0_i32, %c0_i32_0 : i32, i32
  }
  func.func @transform_8(%arg0: i32, %arg1: i32) -> (i32, i32, i32) {
    %c0_i32 = arith.constant 0 : i32
    %c0_i32_0 = arith.constant 0 : i32
    return %arg0, %arg1, %c0_i32 : i32, i32, i32
  }
  func.func @transform_9(%arg0: i32, %arg1: i32) -> (i32, i32, i32) {
    %c0_i32 = arith.constant 0 : i32
    %c0_i32_0 = arith.constant 0 : i32
    %c0_i32_1 = arith.constant 0 : i32
    return %arg0, %c0_i32, %c0_i32_0 : i32, i32, i32
  }
}

</mosaic_0001>

<llo_original>
// kernel: tpu_custom_call.1
$region0: #{tpu_custom_call.1}
  #allocation0 [shape = 'u32[]', space=smem, size = 0x4, offset = 0x4, fixed_abs, tag = 'smem constant byte address 0x4 - core index']
  #allocation1 [shape = 'u32[72,128]{1,0:T(1,128)}', space=vmem, size = 0x9000, scoped, tag = 'internal scratch']
  %s0 = inlined_call_operand.vmem [shape: bf16[2,8,32], index: 0, kind: input, shape index: {}]
  %s1 = inlined_call_operand.vmem [shape: bf16[32,32], index: 1, kind: input, shape index: {}]
  %s2 = inlined_call_operand.hbm [shape: bf16[32,32], index: 2, kind: input, shape index: {}]
  %s3 = inlined_call_operand.hbm [shape: bf16[32,32], index: 3, kind: input, shape index: {}]
  %s4 = inlined_call_operand.vmem [shape: bf16[32,16], index: 4, kind: input, shape index: {}]
  %s5 = inlined_call_operand.hbm [shape: bf16[16,32], index: 5, kind: input, shape index: {}]
  %s6 = inlined_call_operand.hbm [shape: bf16[16,32], index: 6, kind: input, shape index: {}]
  %s7 = inlined_call_operand.hbm [shape: bf16[32,32], index: 7, kind: input, shape index: {}]
  %s8 = inlined_call_operand.hbm [shape: f32[2,8,32], index: 8, kind: output, shape index: {0}]
  %s9 = inlined_call_operand.hbm [shape: f32[2,8,16], index: 9, kind: output, shape index: {1}]
  %10 = xla_tuple %s8, %s9
  %s11 = sld [smem:[#allocation0]]
  $region93: #{tpu_custom_call.1} parent=0
    _
  %s13 = ssub.s32 1, %s11
  %s14 = scalar_select 0, %s13, %s11
  $region1: #{tpu_custom_call.1} parent=0
    #allocation2 [shape = 'u8[8192]{0}', space=vmem, size = 0x2000, scoped, tag = 'input window, operand 2, single buffered']
    #allocation3 [shape = 's32[2]{0}', space=sflag, size = 0x8, scoped, tag = 'scoped memory for tpu_custom_call.1']
    #allocation4 [shape = 's32[2]{0}', space=sflag, size = 0x8, scoped, tag = 'scoped memory for tpu_custom_call.1']
    #allocation5 [shape = 'u8[8192]{0}', space=vmem, size = 0x2000, scoped, tag = 'input window, operand 3, single buffered']
    #allocation6 [shape = 's32[1]{0}', space=sflag, size = 0x4, scoped, tag = 'scoped memory for tpu_custom_call.1']
    #allocation7 [shape = 'u8[4096]{0}', space=vmem, size = 0x1000, scoped, tag = 'input window, operand 5, single buffered']
    #allocation8 [shape = 'u8[4096]{0}', space=vmem, size = 0x1000, scoped, tag = 'input window, operand 6, single buffered']
    #allocation9 [shape = 's32[1]{0}', space=sflag, size = 0x4, scoped, tag = 'scoped memory for tpu_custom_call.1']
    #allocation10 [shape = 'u8[8192]{0}', space=vmem, size = 0x2000, scoped, tag = 'input window, operand 7, single buffered']
    #allocation11 [shape = 'u8[8192]{0}', space=vmem, size = 0x2000, scoped, tag = 'output window, operand 0']
    #allocation12 [shape = 'u8[8192]{0}', space=vmem, size = 0x2000, scoped, tag = 'output window, operand 1']
    #allocation13 [shape = 's32[2]{0}', space=sflag, size = 0x8, scoped, tag = 'scoped memory for tpu_custom_call.1']
    %15 = vsyncpa [#allocation3], 0
    %16 = vsyncpa [#allocation6], 0
    %17 = vsyncpa [#allocation9], 0
    %18 = vsyncpa [#allocation4], 0
    %s19 = scalar_lea.sflag [#allocation4], 1
    %20 = vsyncpa %s19, 0
    %21 = vsyncpa [#allocation13], 0
    %s22 = scalar_lea.sflag [#allocation13], 1
    %23 = vsyncpa %s22, 0
    loop: start=0, step=1, limit=4
    $region2: #{tpu_custom_call.1} parent=1 // loop_pre_header
      _
    $region3: #{tpu_custom_call.1} parent=1 // loop_header
      %s25 = sphi 0, %s29
      %p26 = scmp.ge.s32.totalorder %s25, 4
      %s32 = sphi 0, %s44
      %s33 = sphi 0, %s40
      %s34 = sphi 0, %s32
      %s35 = sphi 0, %s33
      %s36 = sphi 0, %s34
      %s37 = sphi 0, %s35
      %s47 = sphi 0, %s49
      %s50 = sphi 0, %s47
      %s51 = sphi 0, %s50
      %s67 = sphi 0, %s51
      %s71 = sphi 0, %s71
      %s73 = sphi 0, %s71
      %s74 = sphi 0, %s73
      %s88 = sphi 0, %s74
      %s92 = sphi 0, %s92
      %s94 = sphi 0, %s92
      %s95 = sphi 0, %s94
      %s109 = sphi 0, %s95
      %s113 = sphi 0, %s113
      %s115 = sphi 0, %s113
      %s116 = sphi 0, %s115
      %s130 = sphi 0, %s116
      %s134 = sphi 0, %s134
      %s136 = sphi 0, %s134
      %s137 = sphi 0, %s136
      %s151 = sphi 0, %s137
      %s155 = sphi 0, %s155
      %s157 = sphi 0, %s155
      %s158 = sphi 0, %s157
      %s172 = sphi 0, %s158
      %s176 = sphi 0, %s176
      %s178 = sphi 0, %s176
      %s179 = sphi 0, %s178
      %s193 = sphi 0, %s179
      %s197 = sphi 0, %s197
      %s199 = sphi 0, %s197
      %s200 = sphi 0, %s199
      %s214 = sphi 0, %s200
      %s222 = sphi 0, %s224
      %s225 = sphi 0, %s222
      %s226 = sphi 0, %s225
      %s242 = sphi 0, %s226
      %s248 = sphi 0, %s250
      %s251 = sphi 0, %s248
      %s252 = sphi 0, %s251
      %s268 = sphi 0, %s252
    $region4: #{tpu_custom_call.1} parent=1 // loop_header_branch
      %28 = sbr.rel (%p26) target = $region8
    $region5: #{tpu_custom_call.1} parent=1 // loop_body
      %s30 = ssub.s32 %s25, 1
      %s31 = ssub.s32 %s25, 2
      %s38 = sadd.s32 1, %s33
      %p39 = scmp.ge.s32.totalorder %s38, 1
      %s40 = scalar_select %p39, 0, %s38
      %s41 = sadd.s32 1, %s32
      %s42 = scalar_select %p39, %s41, %s32
      %p43 = scmp.ge.s32.totalorder %s42, 2
      %s44 = scalar_select %p43, 0, %s42
      %s45 = ssub.s32 %s32, %s44
      %p46 = scmp.eq.s32.totalorder %s45, 0
      %s48 = sadd.s32 %s47, 1
      %s49 = scalar_select %p46, %s47, %s48
      %p52 = pneg %p46
      %p53 = scmp.eq.s32.totalorder %s25, 1
      %p54 = por %p52, %p53
      %p55 = scmp.ne.s32.totalorder %s47, %s50
      %p56 = scmp.eq.s32.totalorder %s25, 0
      %p57 = por %p55, %p56
      %p58 = scmp.ne.s32.totalorder %s47, %s50
      %p59 = scmp.eq.s32.totalorder %s30, 1
      %p60 = por %p58, %p59
      %p61 = scmp.ne.s32.totalorder %s50, %s51
      %p62 = scmp.eq.s32.totalorder %s30, 0
      %p63 = por %p61, %p62
      %p64 = scmp.ne.s32.totalorder %s50, %s51
      %p65 = scmp.eq.s32.totalorder %s31, 1
      %p66 = por %p64, %p65
      %p68 = scmp.ne.s32.totalorder %s51, %s67
      %p69 = scmp.eq.s32.totalorder %s31, 0
      %p70 = por %p68, %p69
      %s72 = sadd.s32 %s71, 1
      %p75 = scmp.eq.s32.totalorder %s25, 1
      %p76 = scmp.ne.s32.totalorder %s71, %s73
      %p77 = scmp.eq.s32.totalorder %s25, 0
      %p78 = por %p76, %p77
      %p79 = scmp.ne.s32.totalorder %s71, %s73
      %p80 = scmp.eq.s32.totalorder %s30, 1
      %p81 = por %p79, %p80
      %p82 = scmp.ne.s32.totalorder %s73, %s74
      %p83 = scmp.eq.s32.totalorder %s30, 0
      %p84 = por %p82, %p83
      %p85 = scmp.ne.s32.totalorder %s73, %s74
      %p86 = scmp.eq.s32.totalorder %s31, 1
      %p87 = por %p85, %p86
      %p89 = scmp.ne.s32.totalorder %s74, %s88
      %p90 = scmp.eq.s32.totalorder %s31, 0
      %p91 = por %p89, %p90
      %s93 = sadd.s32 %s92, 1
      %p96 = scmp.eq.s32.totalorder %s25, 1
      %p97 = scmp.ne.s32.totalorder %s92, %s94
      %p98 = scmp.eq.s32.totalorder %s25, 0
      %p99 = por %p97, %p98
      %p100 = scmp.ne.s32.totalorder %s92, %s94
      %p101 = scmp.eq.s32.totalorder %s30, 1
      %p102 = por %p100, %p101
      %p103 = scmp.ne.s32.totalorder %s94, %s95
      %p104 = scmp.eq.s32.totalorder %s30, 0
      %p105 = por %p103, %p104
      %p106 = scmp.ne.s32.totalorder %s94, %s95
      %p107 = scmp.eq.s32.totalorder %s31, 1
      %p108 = por %p106, %p107
      %p110 = scmp.ne.s32.totalorder %s95, %s109
      %p111 = scmp.eq.s32.totalorder %s31, 0
      %p112 = por %p110, %p111
      %s114 = sadd.s32 %s113, 1
      %p117 = scmp.eq.s32.totalorder %s25, 1
      %p118 = scmp.ne.s32.totalorder %s113, %s115
      %p119 = scmp.eq.s32.totalorder %s25, 0
      %p120 = por %p118, %p119
      %p121 = scmp.ne.s32.totalorder %s113, %s115
      %p122 = scmp.eq.s32.totalorder %s30, 1
      %p123 = por %p121, %p122
      %p124 = scmp.ne.s32.totalorder %s115, %s116
      %p125 = scmp.eq.s32.totalorder %s30, 0
      %p126 = por %p124, %p125
      %p127 = scmp.ne.s32.totalorder %s115, %s116
      %p128 = scmp.eq.s32.totalorder %s31, 1
      %p129 = por %p127, %p128
      %p131 = scmp.ne.s32.totalorder %s116, %s130
      %p132 = scmp.eq.s32.totalorder %s31, 0
      %p133 = por %p131, %p132
      %s135 = sadd.s32 %s134, 1
      %p138 = scmp.eq.s32.totalorder %s25, 1
      %p139 = scmp.ne.s32.totalorder %s134, %s136
      %p140 = scmp.eq.s32.totalorder %s25, 0
      %p141 = por %p139, %p140
      %p142 = scmp.ne.s32.totalorder %s134, %s136
      %p143 = scmp.eq.s32.totalorder %s30, 1
      %p144 = por %p142, %p143
      %p145 = scmp.ne.s32.totalorder %s136, %s137
      %p146 = scmp.eq.s32.totalorder %s30, 0
      %p147 = por %p145, %p146
      %p148 = scmp.ne.s32.totalorder %s136, %s137
      %p149 = scmp.eq.s32.totalorder %s31, 1
      %p150 = por %p148, %p149
      %p152 = scmp.ne.s32.totalorder %s137, %s151
      %p153 = scmp.eq.s32.totalorder %s31, 0
      %p154 = por %p152, %p153
      %s156 = sadd.s32 %s155, 1
      %p159 = scmp.eq.s32.totalorder %s25, 1
      %p160 = scmp.ne.s32.totalorder %s155, %s157
      %p161 = scmp.eq.s32.totalorder %s25, 0
      %p162 = por %p160, %p161
      %p163 = scmp.ne.s32.totalorder %s155, %s157
      %p164 = scmp.eq.s32.totalorder %s30, 1
      %p165 = por %p163, %p164
      %p166 = scmp.ne.s32.totalorder %s157, %s158
      %p167 = scmp.eq.s32.totalorder %s30, 0
      %p168 = por %p166, %p167
      %p169 = scmp.ne.s32.totalorder %s157, %s158
      %p170 = scmp.eq.s32.totalorder %s31, 1
      %p171 = por %p169, %p170
      %p173 = scmp.ne.s32.totalorder %s158, %s172
      %p174 = scmp.eq.s32.totalorder %s31, 0
      %p175 = por %p173, %p174
      %s177 = sadd.s32 %s176, 1
      %p180 = scmp.eq.s32.totalorder %s25, 1
      %p181 = scmp.ne.s32.totalorder %s176, %s178
      %p182 = scmp.eq.s32.totalorder %s25, 0
      %p183 = por %p181, %p182
      %p184 = scmp.ne.s32.totalorder %s176, %s178
      %p185 = scmp.eq.s32.totalorder %s30, 1
      %p186 = por %p184, %p185
      %p187 = scmp.ne.s32.totalorder %s178, %s179
      %p188 = scmp.eq.s32.totalorder %s30, 0
      %p189 = por %p187, %p188
      %p190 = scmp.ne.s32.totalorder %s178, %s179
      %p191 = scmp.eq.s32.totalorder %s31, 1
      %p192 = por %p190, %p191
      %p194 = scmp.ne.s32.totalorder %s179, %s193
      %p195 = scmp.eq.s32.totalorder %s31, 0
      %p196 = por %p194, %p195
      %s198 = sadd.s32 %s197, 1
      %p201 = scmp.eq.s32.totalorder %s25, 1
      %p202 = scmp.ne.s32.totalorder %s197, %s199
      %p203 = scmp.eq.s32.totalorder %s25, 0
      %p204 = por %p202, %p203
      %p205 = scmp.ne.s32.totalorder %s197, %s199
      %p206 = scmp.eq.s32.totalorder %s30, 1
      %p207 = por %p205, %p206
      %p208 = scmp.ne.s32.totalorder %s199, %s200
      %p209 = scmp.eq.s32.totalorder %s30, 0
      %p210 = por %p208, %p209
      %p211 = scmp.ne.s32.totalorder %s199, %s200
      %p212 = scmp.eq.s32.totalorder %s31, 1
      %p213 = por %p211, %p212
      %p215 = scmp.ne.s32.totalorder %s200, %s214
      %p216 = scmp.eq.s32.totalorder %s31, 0
      %p217 = por %p215, %p216
      %s218 = ssub.s32 %s32, %s44
      %s219 = ssub.s32 %s33, %s40
      %s220 = sor.u32 %s218, %s219
      %p221 = scmp.eq.s32.totalorder %s220, 0
      %s223 = sadd.s32 %s222, 1
      %s224 = scalar_select %p221, %s222, %s223
      %p227 = pneg %p221
      %p228 = scmp.eq.s32.totalorder %s25, 1
      %p229 = por %p227, %p228
      %p230 = scmp.ne.s32.totalorder %s222, %s225
      %p231 = scmp.eq.s32.totalorder %s25, 0
      %p232 = por %p230, %p231
      %p233 = scmp.ne.s32.totalorder %s222, %s225
      %p234 = scmp.eq.s32.totalorder %s30, 1
      %p235 = por %p233, %p234
      %p236 = scmp.ne.s32.totalorder %s225, %s226
      %p237 = scmp.eq.s32.totalorder %s30, 0
      %p238 = por %p236, %p237
      %p239 = scmp.ne.s32.totalorder %s225, %s226
      %p240 = scmp.eq.s32.totalorder %s31, 1
      %p241 = por %p239, %p240
      %p243 = scmp.ne.s32.totalorder %s226, %s242
      %p244 = scmp.eq.s32.totalorder %s31, 0
      %p245 = por %p243, %p244
      %s246 = ssub.s32 %s32, %s44
      %p247 = scmp.eq.s32.totalorder %s246, 0
      %s249 = sadd.s32 %s248, 1
      %s250 = scalar_select %p247, %s248, %s249
      %p253 = pneg %p247
      %p254 = scmp.eq.s32.totalorder %s25, 1
      %p255 = por %p253, %p254
      %p256 = scmp.ne.s32.totalorder %s248, %s251
      %p257 = scmp.eq.s32.totalorder %s25, 0
      %p258 = por %p256, %p257
      %p259 = scmp.ne.s32.totalorder %s248, %s251
      %p260 = scmp.eq.s32.totalorder %s30, 1
      %p261 = por %p259, %p260
      %p262 = scmp.ne.s32.totalorder %s251, %s252
      %p263 = scmp.eq.s32.totalorder %s30, 0
      %p264 = por %p262, %p263
      %p265 = scmp.ne.s32.totalorder %s251, %s252
      %p266 = scmp.eq.s32.totalorder %s31, 1
      %p267 = por %p265, %p266
      %p269 = scmp.ne.s32.totalorder %s252, %s268
      %p270 = scmp.eq.s32.totalorder %s31, 0
      %p271 = por %p269, %p270
      %p272 = scmp.le.s32.totalorder 1, %s25
      %p273 = scmp.lt.s32.totalorder %s25, 3
      %p274 = pnand %p272, %p273
      %p275 = pneg %p274
      // Predicated region
      $region9: #{tpu_custom_call.1} parent=5 // pred_check
        _
      $region10: #{tpu_custom_call.1} parent=5 // pred_check_branch
        %277 = sbr.rel (%p274) target = $region12
      $region11: #{tpu_custom_call.1} parent=5 // pred_region
        %s278 = ssub.s32 %s25, 1
        // Predicated region
        $region13: #{tpu_custom_call.1} parent=11 // pred_check
          %p279 = pneg %p84
        $region14: #{tpu_custom_call.1} parent=11 // pred_check_branch
          %281 = sbr.rel (%p279) target = $region16
        $region15: #{tpu_custom_call.1} parent=11 // pred_region
          _
        $region16: #{tpu_custom_call.1} parent=11 // pred_fallthru
          _
        // Predicated region
        $region17: #{tpu_custom_call.1} parent=11 // pred_check
          %p282 = pneg %p105
        $region18: #{tpu_custom_call.1} parent=11 // pred_check_branch
          %284 = sbr.rel (%p282) target = $region20
        $region19: #{tpu_custom_call.1} parent=11 // pred_region
          %286 = vsyncadd [#allocation3], 0
          %s287 = sshll.u32 %s2, 4
          %s288 = int_to_ptr.hbm [resolvable:$true] %s287
          %s289 = sshll.u32 [#allocation2], 4
          %s290 = int_to_ptr.vmem [resolvable:$true] %s289
          %295 = dma.hbm_to_vmem [thread:$0]  %s288, 256, %s290, [#allocation3], 64, 64, 4
        $region20: #{tpu_custom_call.1} parent=11 // pred_fallthru
          _
        // Predicated region
        $region21: #{tpu_custom_call.1} parent=11 // pred_check
          %p296 = pneg %p126
        $region22: #{tpu_custom_call.1} parent=11 // pred_check_branch
          %298 = sbr.rel (%p296) target = $region24
        $region23: #{tpu_custom_call.1} parent=11 // pred_region
          %300 = vsyncadd [#allocation6], 0
          %s301 = sshll.u32 %s3, 4
          %s302 = int_to_ptr.hbm [resolvable:$true] %s301
          %s303 = sshll.u32 [#allocation5], 4
          %s304 = int_to_ptr.vmem [resolvable:$true] %s303
          %309 = dma.hbm_to_vmem [thread:$0]  %s302, 256, %s304, [#allocation6], 64, 64, 4
        $region24: #{tpu_custom_call.1} parent=11 // pred_fallthru
          _
        // Predicated region
        $region25: #{tpu_custom_call.1} parent=11 // pred_check
          %p310 = pneg %p147
        $region26: #{tpu_custom_call.1} parent=11 // pred_check_branch
          %312 = sbr.rel (%p310) target = $region28
        $region27: #{tpu_custom_call.1} parent=11 // pred_region
          _
        $region28: #{tpu_custom_call.1} parent=11 // pred_fallthru
          _
        // Predicated region
        $region29: #{tpu_custom_call.1} parent=11 // pred_check
          %p313 = pneg %p168
        $region30: #{tpu_custom_call.1} parent=11 // pred_check_branch
          %315 = sbr.rel (%p313) target = $region32
        $region31: #{tpu_custom_call.1} parent=11 // pred_region
          %317 = vsyncadd [#allocation6], 0
          %s318 = sshll.u32 %s5, 4
          %s319 = int_to_ptr.hbm [resolvable:$true] %s318
          %s320 = sshll.u32 [#allocation7], 4
          %s321 = int_to_ptr.vmem [resolvable:$true] %s320
          %326 = dma.hbm_to_vmem [thread:$0]  %s319, 128, %s321, [#allocation6], 64, 64, 4
        $region32: #{tpu_custom_call.1} parent=11 // pred_fallthru
          _
        // Predicated region
        $region33: #{tpu_custom_call.1} parent=11 // pred_check
          %p327 = pneg %p189
        $region34: #{tpu_custom_call.1} parent=11 // pred_check_branch
          %329 = sbr.rel (%p327) target = $region36
        $region35: #{tpu_custom_call.1} parent=11 // pred_region
          %331 = vsyncadd [#allocation9], 0
          %s332 = sshll.u32 %s6, 4
          %s333 = int_to_ptr.hbm [resolvable:$true] %s332
          %s334 = sshll.u32 [#allocation8], 4
          %s335 = int_to_ptr.vmem [resolvable:$true] %s334
          %340 = dma.hbm_to_vmem [thread:$0]  %s333, 128, %s335, [#allocation9], 64, 64, 4
        $region36: #{tpu_custom_call.1} parent=11 // pred_fallthru
          _
        // Predicated region
        $region37: #{tpu_custom_call.1} parent=11 // pred_check
          %p341 = pneg %p210
        $region38: #{tpu_custom_call.1} parent=11 // pred_check_branch
          %343 = sbr.rel (%p341) target = $region40
        $region39: #{tpu_custom_call.1} parent=11 // pred_region
          %345 = vsyncadd [#allocation9], 0
          %s346 = sshll.u32 %s7, 4
          %s347 = int_to_ptr.hbm [resolvable:$true] %s346
          %s348 = sshll.u32 [#allocation10], 4
          %s349 = int_to_ptr.vmem [resolvable:$true] %s348
          %354 = dma.hbm_to_vmem [thread:$0]  %s347, 256, %s349, [#allocation9], 64, 64, 4
        $region40: #{tpu_custom_call.1} parent=11 // pred_fallthru
          _
      $region12: #{tpu_custom_call.1} parent=5 // pred_fallthru
        _
      %p355 = scmp.lt.s32.totalorder %s25, 2
      // Predicated region
      $region41: #{tpu_custom_call.1} parent=5 // pred_check
        %p356 = pneg %p355
      $region42: #{tpu_custom_call.1} parent=5 // pred_check_branch
        %358 = sbr.rel (%p356) target = $region44
      $region43: #{tpu_custom_call.1} parent=5 // pred_region
        // Predicated region
        $region45: #{tpu_custom_call.1} parent=43 // pred_check
          %p359 = pneg %p57
        $region46: #{tpu_custom_call.1} parent=43 // pred_check_branch
          %361 = sbr.rel (%p359) target = $region48
        $region47: #{tpu_custom_call.1} parent=43 // pred_region
          %p362 = scmp.lt.s32.totalorder %s32, 1
          %s363 = scalar_select %p362, %s32, 1
          %s364 = smul.addr %s363, 4
          %s365 = scalar_lea.vmem %s0, %s364
        $region48: #{tpu_custom_call.1} parent=43 // pred_fallthru
          _
      $region44: #{tpu_custom_call.1} parent=5 // pred_fallthru
        _
      %p366 = scmp.le.s32.totalorder 1, %s25
      %p367 = scmp.lt.s32.totalorder %s25, 3
      %p368 = pnand %p366, %p367
      %p369 = pneg %p368
      // Predicated region
      $region49: #{tpu_custom_call.1} parent=5 // pred_check
        _
      $region50: #{tpu_custom_call.1} parent=5 // pred_check_branch
        %371 = sbr.rel (%p368) target = $region52
      $region51: #{tpu_custom_call.1} parent=5 // pred_region
        %s372 = ssub.s32 %s25, 1
        // Predicated region
        $region53: #{tpu_custom_call.1} parent=51 // pred_check
          %p373 = pneg %p105
        $region54: #{tpu_custom_call.1} parent=51 // pred_check_branch
          %375 = sbr.rel (%p373) target = $region56
        $region55: #{tpu_custom_call.1} parent=51 // pred_region
          %377 = dma.done [#allocation3], 256
        $region56: #{tpu_custom_call.1} parent=51 // pred_fallthru
          _
        // Predicated region
        $region57: #{tpu_custom_call.1} parent=51 // pred_check
          %p378 = pneg %p126
        $region58: #{tpu_custom_call.1} parent=51 // pred_check_branch
          %380 = sbr.rel (%p378) target = $region60
        $region59: #{tpu_custom_call.1} parent=51 // pred_region
          %382 = dma.done [#allocation6], 256
        $region60: #{tpu_custom_call.1} parent=51 // pred_fallthru
          _
        // Predicated region
        $region61: #{tpu_custom_call.1} parent=51 // pred_check
          %p383 = pneg %p168
        $region62: #{tpu_custom_call.1} parent=51 // pred_check_branch
          %385 = sbr.rel (%p383) target = $region64
        $region63: #{tpu_custom_call.1} parent=51 // pred_region
          %387 = dma.done [#allocation6], 128
        $region64: #{tpu_custom_call.1} parent=51 // pred_fallthru
          _
        // Predicated region
        $region65: #{tpu_custom_call.1} parent=51 // pred_check
          %p388 = pneg %p189
        $region66: #{tpu_custom_call.1} parent=51 // pred_check_branch
          %390 = sbr.rel (%p388) target = $region68
        $region67: #{tpu_custom_call.1} parent=51 // pred_region
          %392 = dma.done [#allocation9], 128
        $region68: #{tpu_custom_call.1} parent=51 // pred_fallthru
          _
        // Predicated region
        $region69: #{tpu_custom_call.1} parent=51 // pred_check
          %p393 = pneg %p210
        $region70: #{tpu_custom_call.1} parent=51 // pred_check_branch
          %395 = sbr.rel (%p393) target = $region72
        $region71: #{tpu_custom_call.1} parent=51 // pred_region
          %397 = dma.done [#allocation9], 256
        $region72: #{tpu_custom_call.1} parent=51 // pred_fallthru
          _
        %p398 = scmp.lt.s32.totalorder %s34, 1
        %s399 = scalar_select %p398, %s34, 1
        %s400 = smul.addr %s399, 4
        %s401 = scalar_lea.vmem %s0, %s400
        %p402 = pneg %p63
        %p403 = pneg %p60
        %p404 = pneg %p84
        %p405 = pneg %p81
        %p406 = pneg %p105
        %p407 = pneg %p102
        %p408 = pneg %p126
        %p409 = pneg %p123
        %p410 = pneg %p147
        %p411 = pneg %p144
        %p412 = pneg %p168
        %p413 = pneg %p165
        %p414 = pneg %p189
        %p415 = pneg %p186
        %p416 = pneg %p210
        %p417 = pneg %p207
        %p418 = pneg %p238
        %p419 = pneg %p235
        %s420 = sand.u32 %s225, 1
        %s421 = scalar_lea.sflag [#allocation4], %s420
        %s422 = sand.u32 %s225, 1
        %s423 = smul.addr %s422, 8
        %s424 = scalar_lea.vmem [#allocation11], %s423
        %p425 = pneg %p264
        %p426 = pneg %p261
        %s427 = sand.u32 %s251, 1
        %s428 = scalar_lea.sflag [#allocation13], %s427
        %s429 = sand.u32 %s251, 1
        %s430 = smul.addr %s429, 8
        %s431 = scalar_lea.vmem [#allocation12], %s430
        %p432 = scmp.lt.s32.totalorder %s34, 1
        %s433 = scalar_select %p432, %s34, 1
        %s434 = smul.addr %s433, 4
        %s435 = scalar_lea.vmem %s0, %s434
        %v437 = vld [vmem:[%s435] sm:$0xf]
        %v438 = vld [vmem:[#allocation2] sm:$0xf]
        %v439 = vld [vmem:[#allocation2 + $0x4] sm:$0xf]
        %v440 = vld [vmem:[#allocation2 + $0x8] sm:$0xf]
        %v441 = vld [vmem:[#allocation2 + $0xc] sm:$0xf]
        %v442 = vld [vmem:[#allocation5] sm:$0xf]
        %v443 = vld [vmem:[#allocation5 + $0x4] sm:$0xf]
        %v444 = vld [vmem:[#allocation5 + $0x8] sm:$0xf]
        %v445 = vld [vmem:[#allocation5 + $0xc] sm:$0xf]
        %v450 = vunpack.c.l.b16 %v442
        %v451 = vunpack.c.l.b16 %v443
        %v452 = vunpack.c.l.b16 %v444
        %v453 = vunpack.c.l.b16 %v445
        %v454 = vpack.c.b16 %v451, %v450
        %v455 = vpack.c.b16 %v453, %v452
        %vm458 = vcmask 261120
        %v460 = vsel %vm458, %v437, 0
        %462 = vmatpush.bf16.msra.mxu0 0
        %463 = vmatpush.bf16.msra.mxu0 0
        %464 = vmatpush.bf16.msra.mxu0 0
        %465 = vmatpush.bf16.msra.mxu0 0
        %466 = vmatpush.bf16.msra.mxu0 0
        %467 = vmatpush.bf16.msra.mxu0 0
        %468 = vmatpush.bf16.msra.mxu0 %v455
        %469 = vmatpush.bf16.msra.mxu0 %v454
        %470 = vmatmul.bf16.gmra.mxu0 %v460
        %v471 = vpop.f32.mrf.mxu0
        %v472 = vadd.f32 0.0, %v471
        %v473 = vpop.f32.mrf.mxu0
        %474 = vdwg.mxu0
        %v479 = vunpack.c.l.b16 %v438
        %v480 = vunpack.c.l.b16 %v439
        %v481 = vunpack.c.l.b16 %v440
        %v482 = vunpack.c.l.b16 %v441
        %v483 = vpack.c.b16 %v480, %v479
        %v484 = vpack.c.b16 %v482, %v481
        %487 = vmatpush.bf16.msra.mxu0 0
        %488 = vmatpush.bf16.msra.mxu0 0
        %489 = vmatpush.bf16.msra.mxu0 0
        %490 = vmatpush.bf16.msra.mxu0 0
        %491 = vmatpush.bf16.msra.mxu0 0
        %492 = vmatpush.bf16.msra.mxu0 0
        %493 = vmatpush.bf16.msra.mxu0 %v484
        %494 = vmatpush.bf16.msra.mxu0 %v483
        %495 = vmatmul.bf16.gmra.mxu0 %v460
        %v496 = vpop.f32.mrf.mxu0
        %v497 = vadd.f32 %v472, %v496
        %v498 = vpop.f32.mrf.mxu0
        %499 = vdwg.mxu0
        %v500 = vpack.c.bf16 %v497, %v497
        %v501 = vld [vmem:[%s4] sm:$0xf]
        %v502 = vld [vmem:[%s4 + $0x4] sm:$0xf]
        %v503 = vld [vmem:[%s4 + $0x8] sm:$0xf]
        %v504 = vld [vmem:[%s4 + $0xc] sm:$0xf]
        %v509 = vunpack.c.l.b16 %v501
        %v510 = vunpack.c.l.b16 %v502
        %v511 = vunpack.c.l.b16 %v503
        %v512 = vunpack.c.l.b16 %v504
        %v513 = vpack.c.b16 %v510, %v509
        %v514 = vpack.c.b16 %v512, %v511
        %v518 = vsel %vm458, %v500, 0
        %520 = vmatpush.bf16.msra.mxu0 0
        %521 = vmatpush.bf16.msra.mxu0 0
        %522 = vmatpush.bf16.msra.mxu0 0
        %523 = vmatpush.bf16.msra.mxu0 0
        %524 = vmatpush.bf16.msra.mxu0 0
        %525 = vmatpush.bf16.msra.mxu0 0
        %526 = vmatpush.bf16.msra.mxu0 %v514
        %527 = vmatpush.bf16.msra.mxu0 %v513
        %528 = vmatmul.bf16.gmra.mxu0 %v518
        %v529 = vpop.f32.mrf.mxu0
        %v530 = vadd.f32 0.0, %v529
        %v531 = vpop.f32.mrf.mxu0
        %532 = vdwg.mxu0
        %vm533 = vcmask 130048
        %534 = vst.msk [vmem:[%s431] sm:$0xff] %vm533, %v530
        %v535 = vpack.c.bf16 %v530, %v530
        %v536 = vld [vmem:[#allocation7] sm:$0xf]
        %v537 = vld [vmem:[#allocation7 + $0x4] sm:$0xf]
        %v540 = vunpack.c.l.b16 %v536
        %v541 = vunpack.c.l.b16 %v537
        %v542 = vpack.c.b16 %v541, %v540
        %v545 = vsel %vm533, %v535, 0
        %547 = vmatpush.bf16.msra.mxu0 0
        %548 = vmatpush.bf16.msra.mxu0 0
        %549 = vmatpush.bf16.msra.mxu0 0
        %550 = vmatpush.bf16.msra.mxu0 0
        %551 = vmatpush.bf16.msra.mxu0 0
        %552 = vmatpush.bf16.msra.mxu0 0
        %553 = vmatpush.bf16.msra.mxu0 0
        %554 = vmatpush.bf16.msra.mxu0 %v542
        %555 = vmatmul.bf16.gmra.mxu0 %v545
        %v556 = vpop.f32.mrf.mxu0
        %v557 = vadd.f32 0.0, %v556
        %v558 = vpop.f32.mrf.mxu0
        %559 = vdwg.mxu0
        %v560 = vld [vmem:[#allocation8] sm:$0xf]
        %v561 = vld [vmem:[#allocation8 + $0x4] sm:$0xf]
        %v564 = vunpack.c.l.b16 %v560
        %v565 = vunpack.c.l.b16 %v561
        %v566 = vpack.c.b16 %v565, %v564
        %568 = vmatpush.bf16.msra.mxu0 0
        %569 = vmatpush.bf16.msra.mxu0 0
        %570 = vmatpush.bf16.msra.mxu0 0
        %571 = vmatpush.bf16.msra.mxu0 0
        %572 = vmatpush.bf16.msra.mxu0 0
        %573 = vmatpush.bf16.msra.mxu0 0
        %574 = vmatpush.bf16.msra.mxu0 0
        %575 = vmatpush.bf16.msra.mxu0 %v566
        %576 = vmatmul.bf16.gmra.mxu0 %v545
        %v577 = vpop.f32.mrf.mxu0
        %v578 = vadd.f32 0.0, %v577
        %v579 = vpop.f32.mrf.mxu0
        %580 = vdwg.mxu0
        %s581 = smul.u32 %s35, 8
        %s582 = sshra.s32 %s581, 3
        %s583 = sand.u32 %s581, 7
        %s584 = smul.addr %s582, 4
        %s585 = scalar_lea.vmem %s435, %s584
        %v586 = vld [vmem:[%s585] sm:$0xf]
        %v587 = vld [vmem:[%s1] sm:$0xf]
        %v588 = vld [vmem:[%s1 + $0x4] sm:$0xf]
        %v589 = vld [vmem:[%s1 + $0x8] sm:$0xf]
        %v590 = vld [vmem:[%s1 + $0xc] sm:$0xf]
        %v595 = vunpack.c.l.b16 %v587
        %v596 = vunpack.c.l.b16 %v588
        %v597 = vunpack.c.l.b16 %v589
        %v598 = vunpack.c.l.b16 %v590
        %v599 = vpack.c.b16 %v596, %v595
        %v600 = vpack.c.b16 %v598, %v597
        %v604 = vsel %vm458, %v586, 0
        %606 = vmatpush.bf16.msra.mxu0 0
        %607 = vmatpush.bf16.msra.mxu0 0
        %608 = vmatpush.bf16.msra.mxu0 0
        %609 = vmatpush.bf16.msra.mxu0 0
        %610 = vmatpush.bf16.msra.mxu0 0
        %611 = vmatpush.bf16.msra.mxu0 0
        %612 = vmatpush.bf16.msra.mxu0 %v600
        %613 = vmatpush.bf16.msra.mxu0 %v599
        %614 = vmatmul.bf16.gmra.mxu0 %v604
        %v615 = vpop.f32.mrf.mxu0
        %v616 = vadd.f32 0.0, %v615
        %v617 = vpop.f32.mrf.mxu0
        %618 = vdwg.mxu0
        %v619 = vpack.c.bf16 %v616, %v616
        %621 = vrot.lane.b32.xlu0 %v619, 120
        %v622 = vpop.permute.xlu0 %621
        %623 = vrot.lane.b32.xlu0 %v619, 112
        %v624 = vpop.permute.xlu0 %623
        %625 = vrot.lane.b32.xlu0 %v619, 104
        %v626 = vpop.permute.xlu0 %625
        %v629 = vpack.i.b16 %v622, %v619
        %v630 = vshrl.u32 %v619, 16
        %v631 = vshrl.u32 %v622, 16
        %v632 = vpack.i.b16 %v631, %v630
        %v635 = vpack.i.b16 %v626, %v624
        %v636 = vshrl.u32 %v624, 16
        %v637 = vshrl.u32 %v626, 16
        %v638 = vpack.i.b16 %v637, %v636
        %v641 = vunpack.c.l.s4 1983009808
        %v642 = vunpack.c.0.s8 %v641
        %v643 = vperm.slane %v629, %v642
        %v646 = vunpack.c.l.s4 1983009808
        %v647 = vunpack.c.0.s8 %v646
        %v648 = vperm.slane %v635, %v647
        %v649 = vrot.slane %v648, 4
        %vm650 = vcmask 1047556
        %v651 = vsel %vm650, %v649, %v643
        %v652 = vrot.slane %v643, 4
        %v653 = vsel %vm650, %v648, %v652
        %v655 = vunpack.c.l.s4 1934713408
        %v656 = vunpack.c.0.s8 %v655
        %v657 = vperm.slane %v651, %v656
        %v659 = vunpack.c.l.s4 1934713408
        %v660 = vunpack.c.0.s8 %v659
        %v661 = vperm.slane %v653, %v660
        %v662 = vrot.slane %v657, 4
        %v663 = vsel %vm650, 0, %v662
        %v664 = vrot.slane %v661, 4
        %v665 = vsel %vm650, 0, %v664
        %v668 = vunpack.c.l.s4 1983009808
        %v669 = vunpack.c.0.s8 %v668
        %v670 = vperm.slane %v632, %v669
        %v673 = vunpack.c.l.s4 1983009808
        %v674 = vunpack.c.0.s8 %v673
        %v675 = vperm.slane %v638, %v674
        %v676 = vrot.slane %v675, 4
        %v677 = vsel %vm650, %v676, %v670
        %v678 = vrot.slane %v670, 4
        %v679 = vsel %vm650, %v675, %v678
        %v681 = vunpack.c.l.s4 1934713408
        %v682 = vunpack.c.0.s8 %v681
        %v683 = vperm.slane %v677, %v682
        %v685 = vunpack.c.l.s4 1934713408
        %v686 = vunpack.c.0.s8 %v685
        %v687 = vperm.slane %v679, %v686
        %v688 = vrot.slane %v683, 4
        %v689 = vsel %vm650, 0, %v688
        %v690 = vrot.slane %v687, 4
        %v691 = vsel %vm650, 0, %v690
        %v692 = vsel %vm650, %v664, %v657
        %v694 = vunpack.c.l.s4 1983009808
        %v695 = vunpack.c.0.s8 %v694
        %v696 = vperm.slane %v692, %v695
        %v697 = vrot.slane %v665, 4
        %v698 = vsel %vm650, %v697, %v663
        %v700 = vunpack.c.l.s4 1983009808
        %v701 = vunpack.c.0.s8 %v700
        %v702 = vperm.slane %v698, %v701
        %v703 = vrot.slane %v702, 4
        %v704 = vsel %vm650, %v703, %v696
        %v706 = vunpack.c.l.s4 1934713408
        %v707 = vunpack.c.0.s8 %v706
        %v708 = vperm.slane %v704, %v707
        %v709 = vrot.slane %v708, 4
        %v710 = vsel %vm650, 0, %v709
        %v711 = vsel %vm650, %v690, %v683
        %v713 = vunpack.c.l.s4 1983009808
        %v714 = vunpack.c.0.s8 %v713
        %v715 = vperm.slane %v711, %v714
        %v716 = vrot.slane %v691, 4
        %v717 = vsel %vm650, %v716, %v689
        %v719 = vunpack.c.l.s4 1983009808
        %v720 = vunpack.c.0.s8 %v719
        %v721 = vperm.slane %v717, %v720
        %v722 = vrot.slane %v721, 4
        %v723 = vsel %vm650, %v722, %v715
        %v725 = vunpack.c.l.s4 1934713408
        %v726 = vunpack.c.0.s8 %v725
        %v727 = vperm.slane %v723, %v726
        %v728 = vrot.slane %v727, 4
        %v729 = vsel %vm650, 0, %v728
        %v732 = vpack.i.b16 %v727, %v708
        %v733 = vshrl.u32 %v708, 16
        %v734 = vshrl.u32 %v727, 16
        %v735 = vpack.i.b16 %v734, %v733
        %v738 = vpack.i.b16 %v729, %v710
        %v739 = vshrl.u32 %v710, 16
        %v740 = vshrl.u32 %v729, 16
        %v741 = vpack.i.b16 %v740, %v739
        %v742 = vpack.c.bf16 %v557, %v557
        %744 = vrot.lane.b32.xlu0 %v742, 120
        %v745 = vpop.permute.xlu0 %744
        %746 = vrot.lane.b32.xlu0 %v742, 112
        %v747 = vpop.permute.xlu0 %746
        %748 = vrot.lane.b32.xlu0 %v742, 104
        %v749 = vpop.permute.xlu0 %748
        %v752 = vpack.i.b16 %v745, %v742
        %v753 = vshrl.u32 %v742, 16
        %v754 = vshrl.u32 %v745, 16
        %v755 = vpack.i.b16 %v754, %v753
        %v758 = vpack.i.b16 %v749, %v747
        %v759 = vshrl.u32 %v747, 16
        %v760 = vshrl.u32 %v749, 16
        %v761 = vpack.i.b16 %v760, %v759
        %v764 = vunpack.c.l.s4 1983009808
        %v765 = vunpack.c.0.s8 %v764
        %v766 = vperm.slane %v752, %v765
        %v769 = vunpack.c.l.s4 1983009808
        %v770 = vunpack.c.0.s8 %v769
        %v771 = vperm.slane %v758, %v770
        %v772 = vrot.slane %v771, 4
        %v773 = vsel %vm650, %v772, %v766
        %v774 = vrot.slane %v766, 4
        %v775 = vsel %vm650, %v771, %v774
        %v777 = vunpack.c.l.s4 1934713408
        %v778 = vunpack.c.0.s8 %v777
        %v779 = vperm.slane %v773, %v778
        %v781 = vunpack.c.l.s4 1934713408
        %v782 = vunpack.c.0.s8 %v781
        %v783 = vperm.slane %v775, %v782
        %v784 = vrot.slane %v779, 4
        %v785 = vsel %vm650, 0, %v784
        %v786 = vrot.slane %v783, 4
        %v787 = vsel %vm650, 0, %v786
        %v790 = vunpack.c.l.s4 1983009808
        %v791 = vunpack.c.0.s8 %v790
        %v792 = vperm.slane %v755, %v791
        %v795 = vunpack.c.l.s4 1983009808
        %v796 = vunpack.c.0.s8 %v795
        %v797 = vperm.slane %v761, %v796
        %v798 = vrot.slane %v797, 4
        %v799 = vsel %vm650, %v798, %v792
        %v800 = vrot.slane %v792, 4
        %v801 = vsel %vm650, %v797, %v800
        %v803 = vunpack.c.l.s4 1934713408
        %v804 = vunpack.c.0.s8 %v803
        %v805 = vperm.slane %v799, %v804
        %v807 = vunpack.c.l.s4 1934713408
        %v808 = vunpack.c.0.s8 %v807
        %v809 = vperm.slane %v801, %v808
        %v810 = vrot.slane %v805, 4
        %v811 = vsel %vm650, 0, %v810
        %v812 = vrot.slane %v809, 4
        %v813 = vsel %vm650, 0, %v812
        %v814 = vsel %vm650, %v786, %v779
        %v816 = vunpack.c.l.s4 1983009808
        %v817 = vunpack.c.0.s8 %v816
        %v818 = vperm.slane %v814, %v817
        %v819 = vrot.slane %v787, 4
        %v820 = vsel %vm650, %v819, %v785
        %v822 = vunpack.c.l.s4 1983009808
        %v823 = vunpack.c.0.s8 %v822
        %v824 = vperm.slane %v820, %v823
        %v825 = vrot.slane %v824, 4
        %v826 = vsel %vm650, %v825, %v818
        %v828 = vunpack.c.l.s4 1934713408
        %v829 = vunpack.c.0.s8 %v828
        %v830 = vperm.slane %v826, %v829
        %v831 = vrot.slane %v830, 4
        %v832 = vsel %vm650, 0, %v831
        %v833 = vsel %vm650, %v812, %v805
        %v835 = vunpack.c.l.s4 1983009808
        %v836 = vunpack.c.0.s8 %v835
        %v837 = vperm.slane %v833, %v836
        %v838 = vrot.slane %v813, 4
        %v839 = vsel %vm650, %v838, %v811
        %v841 = vunpack.c.l.s4 1983009808
        %v842 = vunpack.c.0.s8 %v841
        %v843 = vperm.slane %v839, %v842
        %v844 = vrot.slane %v843, 4
        %v845 = vsel %vm650, %v844, %v837
        %v847 = vunpack.c.l.s4 1934713408
        %v848 = vunpack.c.0.s8 %v847
        %v849 = vperm.slane %v845, %v848
        %v850 = vrot.slane %v849, 4
        %v851 = vsel %vm650, 0, %v850
        %v854 = vpack.i.b16 %v849, %v830
        %v855 = vshrl.u32 %v830, 16
        %v856 = vshrl.u32 %v849, 16
        %v857 = vpack.i.b16 %v856, %v855
        %v860 = vpack.i.b16 %v851, %v832
        %v861 = vshrl.u32 %v832, 16
        %v862 = vshrl.u32 %v851, 16
        %v863 = vpack.i.b16 %v862, %v861
        %v864 = vpack.c.bf16 %v578, %v578
        %866 = vrot.lane.b32.xlu0 %v864, 120
        %v867 = vpop.permute.xlu0 %866
        %868 = vrot.lane.b32.xlu0 %v864, 112
        %v869 = vpop.permute.xlu0 %868
        %870 = vrot.lane.b32.xlu0 %v864, 104
        %v871 = vpop.permute.xlu0 %870
        %v874 = vpack.i.b16 %v867, %v864
        %v875 = vshrl.u32 %v864, 16
        %v876 = vshrl.u32 %v867, 16
        %v877 = vpack.i.b16 %v876, %v875
        %v880 = vpack.i.b16 %v871, %v869
        %v881 = vshrl.u32 %v869, 16
        %v882 = vshrl.u32 %v871, 16
        %v883 = vpack.i.b16 %v882, %v881
        %v886 = vunpack.c.l.s4 1983009808
        %v887 = vunpack.c.0.s8 %v886
        %v888 = vperm.slane %v874, %v887
        %v891 = vunpack.c.l.s4 1983009808
        %v892 = vunpack.c.0.s8 %v891
        %v893 = vperm.slane %v880, %v892
        %v894 = vrot.slane %v893, 4
        %v895 = vsel %vm650, %v894, %v888
        %v896 = vrot.slane %v888, 4
        %v897 = vsel %vm650, %v893, %v896
        %v899 = vunpack.c.l.s4 1934713408
        %v900 = vunpack.c.0.s8 %v899
        %v901 = vperm.slane %v895, %v900
        %v903 = vunpack.c.l.s4 1934713408
        %v904 = vunpack.c.0.s8 %v903
        %v905 = vperm.slane %v897, %v904
        %v906 = vrot.slane %v901, 4
        %v907 = vsel %vm650, 0, %v906
        %v908 = vrot.slane %v905, 4
        %v909 = vsel %vm650, 0, %v908
        %v912 = vunpack.c.l.s4 1983009808
        %v913 = vunpack.c.0.s8 %v912
        %v914 = vperm.slane %v877, %v913
        %v917 = vunpack.c.l.s4 1983009808
        %v918 = vunpack.c.0.s8 %v917
        %v919 = vperm.slane %v883, %v918
        %v920 = vrot.slane %v919, 4
        %v921 = vsel %vm650, %v920, %v914
        %v922 = vrot.slane %v914, 4
        %v923 = vsel %vm650, %v919, %v922
        %v925 = vunpack.c.l.s4 1934713408
        %v926 = vunpack.c.0.s8 %v925
        %v927 = vperm.slane %v921, %v926
        %v929 = vunpack.c.l.s4 1934713408
        %v930 = vunpack.c.0.s8 %v929
        %v931 = vperm.slane %v923, %v930
        %v932 = vrot.slane %v927, 4
        %v933 = vsel %vm650, 0, %v932
        %v934 = vrot.slane %v931, 4
        %v935 = vsel %vm650, 0, %v934
        %v936 = vsel %vm650, %v908, %v901
        %v938 = vunpack.c.l.s4 1983009808
        %v939 = vunpack.c.0.s8 %v938
        %v940 = vperm.slane %v936, %v939
        %v941 = vrot.slane %v909, 4
        %v942 = vsel %vm650, %v941, %v907
        %v944 = vunpack.c.l.s4 1983009808
        %v945 = vunpack.c.0.s8 %v944
        %v946 = vperm.slane %v942, %v945
        %v947 = vrot.slane %v946, 4
        %v948 = vsel %vm650, %v947, %v940
        %v950 = vunpack.c.l.s4 1934713408
        %v951 = vunpack.c.0.s8 %v950
        %v952 = vperm.slane %v948, %v951
        %v953 = vrot.slane %v952, 4
        %v954 = vsel %vm650, 0, %v953
        %v955 = vsel %vm650, %v934, %v927
        %v957 = vunpack.c.l.s4 1983009808
        %v958 = vunpack.c.0.s8 %v957
        %v959 = vperm.slane %v955, %v958
        %v960 = vrot.slane %v935, 4
        %v961 = vsel %vm650, %v960, %v933
        %v963 = vunpack.c.l.s4 1983009808
        %v964 = vunpack.c.0.s8 %v963
        %v965 = vperm.slane %v961, %v964
        %v966 = vrot.slane %v965, 4
        %v967 = vsel %vm650, %v966, %v959
        %v969 = vunpack.c.l.s4 1934713408
        %v970 = vunpack.c.0.s8 %v969
        %v971 = vperm.slane %v967, %v970
        %v972 = vrot.slane %v971, 4
        %v973 = vsel %vm650, 0, %v972
        %v976 = vpack.i.b16 %v971, %v952
        %v977 = vshrl.u32 %v952, 16
        %v978 = vshrl.u32 %v971, 16
        %v979 = vpack.i.b16 %v978, %v977
        %v982 = vpack.i.b16 %v973, %v954
        %v983 = vshrl.u32 %v954, 16
        %v984 = vshrl.u32 %v973, 16
        %v985 = vpack.i.b16 %v984, %v983
        %vm986 = vcmask 64512
        %v988 = vsel %vm986, %v732, 0
        %v991 = vsel %vm986, %v854, 0
        %993 = vmatpush.bf16.xpose.msra.mxu0 0
        %994 = vmatpush.bf16.xpose.msra.mxu0 0
        %995 = vmatpush.bf16.xpose.msra.mxu0 0
        %996 = vmatpush.bf16.xpose.msra.mxu0 0
        %997 = vmatpush.bf16.xpose.msra.mxu0 0
        %998 = vmatpush.bf16.xpose.msra.mxu0 0
        %999 = vmatpush.bf16.xpose.msra.mxu0 0
        %1000 = vmatpush.bf16.xpose.msra.mxu0 %v991
        %1001 = vmatmul.bf16.gmra.mxu0 %v988
        %v1002 = vpop.f32.mrf.mxu0
        %v1003 = vadd.f32 0.0, %v1002
        %v1004 = vpop.f32.mrf.mxu0
        %1005 = vdwg.mxu0
        %v1007 = vsel %vm986, %v735, 0
        %v1010 = vsel %vm986, %v857, 0
        %1012 = vmatpush.bf16.xpose.msra.mxu0 0
        %1013 = vmatpush.bf16.xpose.msra.mxu0 0
        %1014 = vmatpush.bf16.xpose.msra.mxu0 0
        %1015 = vmatpush.bf16.xpose.msra.mxu0 0
        %1016 = vmatpush.bf16.xpose.msra.mxu0 0
        %1017 = vmatpush.bf16.xpose.msra.mxu0 0
        %1018 = vmatpush.bf16.xpose.msra.mxu0 0
        %1019 = vmatpush.bf16.xpose.msra.mxu0 %v1010
        %1020 = vmatmul.bf16.gmra.mxu0 %v1007
        %v1021 = vpop.f32.mrf.mxu0
        %v1022 = vadd.f32 0.0, %v1021
        %v1023 = vpop.f32.mrf.mxu0
        %1024 = vdwg.mxu0
        %v1026 = vsel %vm986, %v738, 0
        %v1029 = vsel %vm986, %v860, 0
        %1031 = vmatpush.bf16.xpose.msra.mxu0 0
        %1032 = vmatpush.bf16.xpose.msra.mxu0 0
        %1033 = vmatpush.bf16.xpose.msra.mxu0 0
        %1034 = vmatpush.bf16.xpose.msra.mxu0 0
        %1035 = vmatpush.bf16.xpose.msra.mxu0 0
        %1036 = vmatpush.bf16.xpose.msra.mxu0 0
        %1037 = vmatpush.bf16.xpose.msra.mxu0 0
        %1038 = vmatpush.bf16.xpose.msra.mxu0 %v1029
        %1039 = vmatmul.bf16.gmra.mxu0 %v1026
        %v1040 = vpop.f32.mrf.mxu0
        %v1041 = vadd.f32 0.0, %v1040
        %v1042 = vpop.f32.mrf.mxu0
        %1043 = vdwg.mxu0
        %v1045 = vsel %vm986, %v741, 0
        %v1048 = vsel %vm986, %v863, 0
        %1050 = vmatpush.bf16.xpose.msra.mxu0 0
        %1051 = vmatpush.bf16.xpose.msra.mxu0 0
        %1052 = vmatpush.bf16.xpose.msra.mxu0 0
        %1053 = vmatpush.bf16.xpose.msra.mxu0 0
        %1054 = vmatpush.bf16.xpose.msra.mxu0 0
        %1055 = vmatpush.bf16.xpose.msra.mxu0 0
        %1056 = vmatpush.bf16.xpose.msra.mxu0 0
        %1057 = vmatpush.bf16.xpose.msra.mxu0 %v1048
        %1058 = vmatmul.bf16.gmra.mxu0 %v1045
        %v1059 = vpop.f32.mrf.mxu0
        %v1060 = vadd.f32 0.0, %v1059
        %v1061 = vpop.f32.mrf.mxu0
        %1062 = vdwg.mxu0
        %v1063 = vlaneseq
        %v1064 = vshrl.u32 %v1063, 7
        %v1065 = vstv %s581
        %v1066 = vadd.s32 %v1064, %v1065
        %v1067 = vlaneseq
        %v1068 = vand.u32 %v1067, 127
        %v1069 = vsub.s32 %v1066, %v1068
        %vm1070 = vcmp.lt.s32.totalorder %v1069, 0
        %v1071 = vsub.s32 0, %v1069
        %v1072 = vsel %vm1070, %v1071, %v1069
        %v1073 = vcvt.s32.f32 %v1072
        %v1074 = vmul.f32 %v1073, -0.01
        %v1075 = vmul.f32 %v1074, 1.442695
        %v1076 = vpow.pop %v1075
        %v1077 = vmul.f32 %v1003, %v1076
        %v1078 = vmul.f32 %v1022, %v1076
        %v1079 = vmul.f32 %v1041, %v1076
        %v1080 = vmul.f32 %v1060, %v1076
        %v1081 = vsel %vm986, %v1077, -inf
        %1082 = vmax.xlane.f32.xlu0 %v1081
        %v1083 = vpop.xlane.xlu0 %1082
        %v1084 = vsel %vm986, %v1078, -inf
        %1085 = vmax.xlane.f32.xlu0 %v1084
        %v1086 = vpop.xlane.xlu0 %1085
        %v1087 = vsel %vm986, %v1079, -inf
        %1088 = vmax.xlane.f32.xlu0 %v1087
        %v1089 = vpop.xlane.xlu0 %1088
        %v1090 = vsel %vm986, %v1080, -inf
        %1091 = vmax.xlane.f32.xlu0 %v1090
        %v1092 = vpop.xlane.xlu0 %1091
        %v1093 = vsub.f32 %v1077, %v1083
        %v1094 = vsub.f32 %v1078, %v1086
        %v1095 = vsub.f32 %v1079, %v1089
        %v1096 = vsub.f32 %v1080, %v1092
        %v1097 = vmul.f32 %v1093, 1.442695
        %v1098 = vpow.pop %v1097
        %v1099 = vmul.f32 %v1094, 1.442695
        %v1100 = vpow.pop %v1099
        %v1101 = vmul.f32 %v1095, 1.442695
        %v1102 = vpow.pop %v1101
        %v1103 = vmul.f32 %v1096, 1.442695
        %v1104 = vpow.pop %v1103
        %v1105 = vsel %vm986, %v1098, 0.0
        %1106 = vadd.xlane.f32.xlu0 %v1105
        %v1107 = vpop.xlane.xlu0 %1106
        %v1108 = vsel %vm986, %v1100, 0.0
        %1109 = vadd.xlane.f32.xlu0 %v1108
        %v1110 = vpop.xlane.xlu0 %1109
        %v1111 = vsel %vm986, %v1102, 0.0
        %1112 = vadd.xlane.f32.xlu0 %v1111
        %v1113 = vpop.xlane.xlu0 %1112
        %v1114 = vsel %vm986, %v1104, 0.0
        %1115 = vadd.xlane.f32.xlu0 %v1114
        %v1116 = vpop.xlane.xlu0 %1115
        %v1117 = vpack.c.bf16 %v1098, %v1098
        %v1118 = vpack.c.bf16 %v1100, %v1100
        %v1119 = vpack.c.bf16 %v1102, %v1102
        %v1120 = vpack.c.bf16 %v1104, %v1104
        %v1122 = vsel %vm986, %v1117, 0
        %vm1124 = vcmask 1043456
        %v1126 = vsel %vm1124, %v976, 0
        %1128 = vmatpush.bf16.msra.mxu0 0
        %1129 = vmatpush.bf16.msra.mxu0 0
        %1130 = vmatpush.bf16.msra.mxu0 0
        %1131 = vmatpush.bf16.msra.mxu0 0
        %1132 = vmatpush.bf16.msra.mxu0 0
        %1133 = vmatpush.bf16.msra.mxu0 0
        %1134 = vmatpush.bf16.msra.mxu0 0
        %1135 = vmatpush.bf16.msra.mxu0 %v1126
        %1136 = vmatmul.bf16.gmra.mxu0 %v1122
        %v1137 = vpop.f32.mrf.mxu0
        %v1138 = vadd.f32 0.0, %v1137
        %v1139 = vpop.f32.mrf.mxu0
        %1140 = vdwg.mxu0
        %v1142 = vsel %vm986, %v1118, 0
        %v1145 = vsel %vm1124, %v979, 0
        %1147 = vmatpush.bf16.msra.mxu0 0
        %1148 = vmatpush.bf16.msra.mxu0 0
        %1149 = vmatpush.bf16.msra.mxu0 0
        %1150 = vmatpush.bf16.msra.mxu0 0
        %1151 = vmatpush.bf16.msra.mxu0 0
        %1152 = vmatpush.bf16.msra.mxu0 0
        %1153 = vmatpush.bf16.msra.mxu0 0
        %1154 = vmatpush.bf16.msra.mxu0 %v1145
        %1155 = vmatmul.bf16.gmra.mxu0 %v1142
        %v1156 = vpop.f32.mrf.mxu0
        %v1157 = vadd.f32 0.0, %v1156
        %v1158 = vpop.f32.mrf.mxu0
        %1159 = vdwg.mxu0
        %v1161 = vsel %vm986, %v1119, 0
        %v1164 = vsel %vm1124, %v982, 0
        %1166 = vmatpush.bf16.msra.mxu0 0
        %1167 = vmatpush.bf16.msra.mxu0 0
        %1168 = vmatpush.bf16.msra.mxu0 0
        %1169 = vmatpush.bf16.msra.mxu0 0
        %1170 = vmatpush.bf16.msra.mxu0 0
        %1171 = vmatpush.bf16.msra.mxu0 0
        %1172 = vmatpush.bf16.msra.mxu0 0
        %1173 = vmatpush.bf16.msra.mxu0 %v1164
        %1174 = vmatmul.bf16.gmra.mxu0 %v1161
        %v1175 = vpop.f32.mrf.mxu0
        %v1176 = vadd.f32 0.0, %v1175
        %v1177 = vpop.f32.mrf.mxu0
        %1178 = vdwg.mxu0
        %v1180 = vsel %vm986, %v1120, 0
        %v1183 = vsel %vm1124, %v985, 0
        %1185 = vmatpush.bf16.msra.mxu0 0
        %1186 = vmatpush.bf16.msra.mxu0 0
        %1187 = vmatpush.bf16.msra.mxu0 0
        %1188 = vmatpush.bf16.msra.mxu0 0
        %1189 = vmatpush.bf16.msra.mxu0 0
        %1190 = vmatpush.bf16.msra.mxu0 0
        %1191 = vmatpush.bf16.msra.mxu0 0
        %1192 = vmatpush.bf16.msra.mxu0 %v1183
        %1193 = vmatmul.bf16.gmra.mxu0 %v1180
        %v1194 = vpop.f32.mrf.mxu0
        %v1195 = vadd.f32 0.0, %v1194
        %v1196 = vpop.f32.mrf.mxu0
        %1197 = vdwg.mxu0
        %v1198 = vrcp.pop %v1107
        %v1199 = vrcp.pop %v1110
        %v1200 = vrcp.pop %v1113
        %v1201 = vrcp.pop %v1116
        %v1202 = vmul.f32 %v1138, %v1198
        %v1203 = vmul.f32 %v1157, %v1199
        %v1204 = vmul.f32 %v1176, %v1200
        %v1205 = vmul.f32 %v1195, %v1201
        %v1206 = vrot.slane %v1204, 4
        %vm1207 = vcmask 1047556
        %v1208 = vsel %vm1207, %v1206, %v1202
        %v1209 = vrot.slane %v1202, 4
        %v1210 = vsel %vm1207, %v1204, %v1209
        %v1212 = vunpack.c.l.s4 1983009808
        %v1213 = vunpack.c.0.s8 %v1212
        %v1214 = vperm.slane %v1208, %v1213
        %v1216 = vunpack.c.l.s4 1983009808
        %v1217 = vunpack.c.0.s8 %v1216
        %v1218 = vperm.slane %v1210, %v1217
        %v1219 = vrot.slane %v1205, 4
        %v1220 = vsel %vm1207, %v1219, %v1203
        %v1221 = vrot.slane %v1203, 4
        %v1222 = vsel %vm1207, %v1205, %v1221
        %v1224 = vunpack.c.l.s4 1983009808
        %v1225 = vunpack.c.0.s8 %v1224
        %v1226 = vperm.slane %v1220, %v1225
        %v1228 = vunpack.c.l.s4 1983009808
        %v1229 = vunpack.c.0.s8 %v1228
        %v1230 = vperm.slane %v1222, %v1229
        %v1231 = vrot.slane %v1226, 4
        %v1232 = vsel %vm1207, %v1231, %v1214
        %v1233 = vrot.slane %v1214, 4
        %v1234 = vsel %vm1207, %v1226, %v1233
        %v1236 = vunpack.c.l.s4 1934713408
        %v1237 = vunpack.c.0.s8 %v1236
        %v1238 = vperm.slane %v1232, %v1237
        %v1240 = vunpack.c.l.s4 1934713408
        %v1241 = vunpack.c.0.s8 %v1240
        %v1242 = vperm.slane %v1234, %v1241
        %v1243 = vrot.slane %v1230, 4
        %v1244 = vsel %vm1207, %v1243, %v1218
        %v1245 = vrot.slane %v1218, 4
        %v1246 = vsel %vm1207, %v1230, %v1245
        %v1248 = vunpack.c.l.s4 1934713408
        %v1249 = vunpack.c.0.s8 %v1248
        %v1250 = vperm.slane %v1244, %v1249
        %v1252 = vunpack.c.l.s4 1934713408
        %v1253 = vunpack.c.0.s8 %v1252
        %v1254 = vperm.slane %v1246, %v1253
        %v1255 = vrot.slane %v1238, 4
        %v1256 = vsel %vm1207, 0.0, %v1255
        %v1257 = vrot.slane %v1242, 4
        %v1258 = vsel %vm1207, 0.0, %v1257
        %v1259 = vrot.slane %v1250, 4
        %v1260 = vsel %vm1207, 0.0, %v1259
        %v1261 = vrot.slane %v1254, 4
        %v1262 = vsel %vm1207, 0.0, %v1261
        %v1263 = vsel %vm1207, %v1257, %v1238
        %v1265 = vunpack.c.l.s4 1983009808
        %v1266 = vunpack.c.0.s8 %v1265
        %v1267 = vperm.slane %v1263, %v1266
        %v1268 = vrot.slane %v1258, 4
        %v1269 = vsel %vm1207, %v1268, %v1256
        %v1271 = vunpack.c.l.s4 1983009808
        %v1272 = vunpack.c.0.s8 %v1271
        %v1273 = vperm.slane %v1269, %v1272
        %v1274 = vsel %vm1207, %v1261, %v1250
        %v1276 = vunpack.c.l.s4 1983009808
        %v1277 = vunpack.c.0.s8 %v1276
        %v1278 = vperm.slane %v1274, %v1277
        %v1279 = vrot.slane %v1262, 4
        %v1280 = vsel %vm1207, %v1279, %v1260
        %v1282 = vunpack.c.l.s4 1983009808
        %v1283 = vunpack.c.0.s8 %v1282
        %v1284 = vperm.slane %v1280, %v1283
        %v1285 = vrot.slane %v1273, 4
        %v1286 = vsel %vm1207, %v1285, %v1267
        %v1287 = vrot.slane %v1267, 4
        %v1288 = vsel %vm1207, %v1273, %v1287
        %v1290 = vunpack.c.l.s4 1934713408
        %v1291 = vunpack.c.0.s8 %v1290
        %v1292 = vperm.slane %v1286, %v1291
        %v1294 = vunpack.c.l.s4 1934713408
        %v1295 = vunpack.c.0.s8 %v1294
        %v1296 = vperm.slane %v1288, %v1295
        %v1297 = vrot.slane %v1284, 4
        %v1298 = vsel %vm1207, %v1297, %v1278
        %v1299 = vrot.slane %v1278, 4
        %v1300 = vsel %vm1207, %v1284, %v1299
        %v1302 = vunpack.c.l.s4 1934713408
        %v1303 = vunpack.c.0.s8 %v1302
        %v1304 = vperm.slane %v1298, %v1303
        %v1306 = vunpack.c.l.s4 1934713408
        %v1307 = vunpack.c.0.s8 %v1306
        %v1308 = vperm.slane %v1300, %v1307
        %v1309 = vrot.slane %v1304, 4
        %v1310 = vsel %vm1207, %v1309, %v1292
        %v1311 = vrot.slane %v1292, 4
        %v1312 = vsel %vm1207, %v1304, %v1311
        %v1313 = vrot.slane %v1308, 4
        %v1314 = vsel %vm1207, %v1313, %v1296
        %v1315 = vrot.slane %v1296, 4
        %v1316 = vsel %vm1207, %v1308, %v1315
        %1318 = vrot.lane.b32.xlu0 %v1312, 8
        %v1319 = vpop.permute.xlu0 %1318
        %1322 = vrot.lane.b32.xlu0 %v1314, 16
        %v1323 = vpop.permute.xlu0 %1322
        %1326 = vrot.lane.b32.xlu0 %v1316, 24
        %v1327 = vpop.permute.xlu0 %1326
        %v1329 = vsel %vm986, %v1310, %v1319
        %v1330 = vsel %vm533, %v1329, %v1323
        %vm1331 = vcmask 195584
        %v1332 = vsel %vm1331, %v1330, %v1327
        %v1333 = vpack.c.bf16 %v1332, %v1332
        %v1334 = vld [vmem:[#allocation10] sm:$0xf]
        %v1335 = vld [vmem:[#allocation10 + $0x4] sm:$0xf]
        %v1336 = vld [vmem:[#allocation10 + $0x8] sm:$0xf]
        %v1337 = vld [vmem:[#allocation10 + $0xc] sm:$0xf]
        %v1342 = vunpack.c.l.b16 %v1334
        %v1343 = vunpack.c.l.b16 %v1335
        %v1344 = vunpack.c.l.b16 %v1336
        %v1345 = vunpack.c.l.b16 %v1337
        %v1346 = vpack.c.b16 %v1343, %v1342
        %v1347 = vpack.c.b16 %v1345, %v1344
        %v1351 = vsel %vm458, %v1333, 0
        %1353 = vmatpush.bf16.msra.mxu0 0
        %1354 = vmatpush.bf16.msra.mxu0 0
        %1355 = vmatpush.bf16.msra.mxu0 0
        %1356 = vmatpush.bf16.msra.mxu0 0
        %1357 = vmatpush.bf16.msra.mxu0 0
        %1358 = vmatpush.bf16.msra.mxu0 0
        %1359 = vmatpush.bf16.msra.mxu0 %v1347
        %1360 = vmatpush.bf16.msra.mxu0 %v1346
        %1361 = vmatmul.bf16.gmra.mxu0 %v1351
        %v1362 = vpop.f32.mrf.mxu0
        %v1363 = vadd.f32 0.0, %v1362
        %v1364 = vpop.f32.mrf.mxu0
        %1365 = vdwg.mxu0
        %1366 = vst.msk [vmem:[%s424] sm:$0xff] %vm458, %v1363
        %s1367 = sand.u32 %s225, 1
        %s1368 = scalar_lea.sflag [#allocation4], %s1367
        %s1369 = sand.u32 %s225, 1
        %s1370 = smul.addr %s1369, 8
        %s1371 = scalar_lea.vmem [#allocation11], %s1370
        %s1372 = sand.u32 %s251, 1
        %s1373 = scalar_lea.sflag [#allocation13], %s1372
        %s1374 = sand.u32 %s251, 1
        %s1375 = smul.addr %s1374, 8
        %s1376 = scalar_lea.vmem [#allocation12], %s1375
        // Predicated region
        $region73: #{tpu_custom_call.1} parent=51 // pred_check
          %p1377 = pneg %p235
        $region74: #{tpu_custom_call.1} parent=51 // pred_check_branch
          %1379 = sbr.rel (%p1377) target = $region76
        $region75: #{tpu_custom_call.1} parent=51 // pred_region
          %1381 = vsyncadd %s1368, 0
          %s1382 = sadd.s32 %s35, %s34
          %s1383 = smul.addr %s1382, 8
          %s1384 = scalar_lea.hbm %s8, %s1383
          %s1386 = sshll.u32 %s1371, 4
          %s1387 = int_to_ptr.vmem [resolvable:$true] %s1386
          %s1388 = sshll.u32 %s1384, 4
          %s1389 = int_to_ptr.hbm [resolvable:$true] %s1388
          %1391 = dma.vmem_to_hbm [thread:$0]  %s1387, 128, %s1389, %s1368
        $region76: #{tpu_custom_call.1} parent=51 // pred_fallthru
          _
        // Predicated region
        $region77: #{tpu_custom_call.1} parent=51 // pred_check
          %p1392 = pneg %p261
        $region78: #{tpu_custom_call.1} parent=51 // pred_check_branch
          %1394 = sbr.rel (%p1392) target = $region80
        $region79: #{tpu_custom_call.1} parent=51 // pred_region
          %1396 = vsyncadd %s1373, 0
          %s1397 = smul.addr %s34, 8
          %s1398 = scalar_lea.hbm %s9, %s1397
          %s1400 = sshll.u32 %s1376, 4
          %s1401 = int_to_ptr.vmem [resolvable:$true] %s1400
          %s1402 = sshll.u32 %s1398, 4
          %s1403 = int_to_ptr.hbm [resolvable:$true] %s1402
          %1405 = dma.vmem_to_hbm [thread:$0]  %s1401, 128, %s1403, %s1373
        $region80: #{tpu_custom_call.1} parent=51 // pred_fallthru
          _
      $region52: #{tpu_custom_call.1} parent=5 // pred_fallthru
        _
      %p1406 = scmp.le.s32.totalorder 2, %s25
      // Predicated region
      $region81: #{tpu_custom_call.1} parent=5 // pred_check
        %p1407 = pneg %p1406
      $region82: #{tpu_custom_call.1} parent=5 // pred_check_branch
        %1409 = sbr.rel (%p1407) target = $region84
      $region83: #{tpu_custom_call.1} parent=5 // pred_region
        %s1410 = ssub.s32 %s25, 2
        // Predicated region
        $region85: #{tpu_custom_call.1} parent=83 // pred_check
          %p1411 = pneg %p241
        $region86: #{tpu_custom_call.1} parent=83 // pred_check_branch
          %1413 = sbr.rel (%p1411) target = $region88
        $region87: #{tpu_custom_call.1} parent=83 // pred_region
          %s1414 = sand.u32 %s226, 1
          %s1415 = scalar_lea.sflag [#allocation4], %s1414
          %s1416 = sand.u32 %s226, 1
          %s1417 = smul.addr %s1416, 8
          %s1418 = scalar_lea.vmem [#allocation11], %s1417
          %1420 = dma.done %s1415, 128
        $region88: #{tpu_custom_call.1} parent=83 // pred_fallthru
          _
        // Predicated region
        $region89: #{tpu_custom_call.1} parent=83 // pred_check
          %p1421 = pneg %p267
        $region90: #{tpu_custom_call.1} parent=83 // pred_check_branch
          %1423 = sbr.rel (%p1421) target = $region92
        $region91: #{tpu_custom_call.1} parent=83 // pred_region
          %s1424 = sand.u32 %s252, 1
          %s1425 = scalar_lea.sflag [#allocation13], %s1424
          %s1426 = sand.u32 %s252, 1
          %s1427 = smul.addr %s1426, 8
          %s1428 = scalar_lea.vmem [#allocation12], %s1427
          %1430 = dma.done %s1425, 128
        $region92: #{tpu_custom_call.1} parent=83 // pred_fallthru
          _
      $region84: #{tpu_custom_call.1} parent=5 // pred_fallthru
        _
    $region6: #{tpu_custom_call.1} parent=1 // loop_footer
      %s29 = sadd.s32 1, %s25
    $region7: #{tpu_custom_call.1} parent=1 // loop_footer_branch
      %24 = sbr.rel target = $region3
    $region8: #{tpu_custom_call.1} parent=1 // loop_exit
      _
    %1431 = vsyncpa [#allocation3], 1
    %s1432 = scalar_lea.sflag [#allocation3], 1
    %1433 = vsyncpa %s1432, 1
    %1434 = vsyncpa [#allocation6], 1
    %1435 = vsyncpa [#allocation9], 1
    %1436 = vsyncpa [#allocation4], 1
    %s1437 = scalar_lea.sflag [#allocation4], 1
    %1438 = vsyncpa %s1437, 1
    %1439 = vsyncpa [#allocation13], 1
    %s1440 = scalar_lea.sflag [#allocation13], 1
    %1441 = vsyncpa %s1440, 1

</llo_original>
